<compile_context>
chip_gen: v6e
topology: v6e:2x2x1
jax: 0.10.0
libtpu: 0.0.40
codegen_flags: <defaults>
</compile_context>

<pallas_src>
import math
import jax
import jax.numpy as jnp
from jax.experimental import pallas as pl
from jax.experimental.pallas import tpu as pltpu

GROUPS = 32
EPS = 1e-5

# Explicit scoped-VMEM budget (defaults are 16/32 MiB).  Re-derive for v7x
# (64 MiB physical) if tile sizes are raised above the 512 cap used below.
VMEM_LIMIT = 64 * 1024 * 1024


def _const_spec(shape):
    """BlockSpec for an operand whose block index never changes across the grid.

    The block index is constant, so the pipeline DMAs it once and keeps it
    resident (no per-step re-fetch)."""
    return pl.BlockSpec(shape, lambda *_: (0,) * len(shape))


def _pick_tile(s, target=512):
    """Largest divisor of s that is <= target and a multiple of 8 (else s).

    512 keeps q/k/v/scores tiles + double buffering comfortably inside v7x's
    64 MiB VMEM while still filling the MXU.
    """
    if s <= target:
        return s
    t = target
    while t >= 8:
        if s % t == 0:
            return t
        t -= 8
    return s


# --------------------------------------------------------------------------
# Kernel A: GroupNorm (full spatial stats) + fused bf16 QKV projection.
# --------------------------------------------------------------------------
def _gn_qkv_kernel(x_ref, red_ref, bcast_ref, gamma_ref, beta_ref,
                   wq_ref, wk_ref, wv_ref, bq_ref, bk_ref, bv_ref,
                   q_ref, k_ref, v_ref):
    x = x_ref[0]                                   # (S, C) f32  (residual stays in HBM)

    # Group statistics via factored one-hot matmuls: (1,C)@(C,G) then (1,G)@(G,C).
    # red is scaled by 1/(group_size*S) so the reduce already yields the mean.
    s1 = jnp.sum(x, axis=0, keepdims=True)         # (1, C)
    mean = jnp.dot(
        jnp.dot(s1, red_ref[...], preferred_element_type=jnp.float32),
        bcast_ref[...], preferred_element_type=jnp.float32)              # (1, C)

    # Centered (two-pass) variance: avoids E[x^2]-E[x]^2 cancellation.
    xc = x - mean
    s2 = jnp.sum(xc * xc, axis=0, keepdims=True)   # (1, C)
    var = jnp.dot(
        jnp.dot(s2, red_ref[...], preferred_element_type=jnp.float32),
        bcast_ref[...], preferred_element_type=jnp.float32)              # (1, C)
    inv = jax.lax.rsqrt(var + EPS)

    # Normalize + affine, cast once to bf16 for the MXU (only the bf16 copy
    # needs to stay live across the three projections).
    xn = (xc * (inv * gamma_ref[...]) + beta_ref[...]).astype(jnp.bfloat16)

    # Three (S,C)@(C,C) projections, each written directly to its bf16 output
    # so only one (S,C) f32 accumulation result is live at a time.
    # The 1/sqrt(C) attention scale is pre-folded into wq / bq.
    q_ref[0] = (jnp.dot(xn, wq_ref[...], preferred_element_type=jnp.float32)
                + bq_ref[...]).astype(q_ref.dtype)
    k_ref[0] = (jnp.dot(xn, wk_ref[...], preferred_element_type=jnp.float32)
                + bk_ref[...]).astype(k_ref.dtype)
    v_ref[0] = (jnp.dot(xn, wv_ref[...], preferred_element_type=jnp.float32)
                + bv_ref[...]).astype(v_ref.dtype)


# --------------------------------------------------------------------------
# Kernel B: flash attention (online softmax) + output projection + residual.
# --------------------------------------------------------------------------
def _flash_attn_kernel(q_ref, k_ref, v_ref, res_ref, wo_ref, bo_ref, o_ref,
                       m_sc, l_sc, acc_sc):
    kv = pl.program_id(2)

    @pl.when(kv == 0)
    def _():
        m_sc[...] = jnp.full_like(m_sc, -jnp.inf)
        l_sc[...] = jnp.zeros_like(l_sc)
        acc_sc[...] = jnp.zeros_like(acc_sc)

    q = q_ref[0]                                   # (tq, C) bf16 (scale already folded)
    k = k_ref[0]                                   # (tk, C) bf16
    # Contract over C without an explicit .T (no XLU transpose of the K tile).
    s = jax.lax.dot_general(q, k, (((1,), (1,)), ((), ())),
                            preferred_element_type=jnp.float32)          # (tq, tk) f32

    m_prev = m_sc[...]
    m_new = jnp.maximum(m_prev, jnp.max(s, axis=-1, keepdims=True))
    alpha = jnp.exp(m_prev - m_new)
    p = jnp.exp(s - m_new)                         # unnormalized probabilities (f32)
    l_sc[...] = alpha * l_sc[...] + jnp.sum(p, axis=-1, keepdims=True)
    acc_sc[...] = alpha * acc_sc[...] + jnp.dot(
        p.astype(jnp.bfloat16), v_ref[0], preferred_element_type=jnp.float32)
    m_sc[...] = m_new

    @pl.when(kv == pl.num_programs(2) - 1)
    def _():
        # Deferred normalization: one (tq, C) multiply, reciprocal on the EUP.
        attn = acc_sc[...] * pl.reciprocal(l_sc[...], approx=True)
        out = jnp.dot(attn.astype(jnp.bfloat16), wo_ref[...],
                      preferred_element_type=jnp.float32) + bo_ref[...]
        o_ref[0] = (out + res_ref[0]).astype(o_ref.dtype)


# --------------------------------------------------------------------------
# Wrapper
# --------------------------------------------------------------------------
def vae_attention_block(x_nchw, params):
    """x_nchw: (N, C, H, W) float32. Returns (N, C, H, W) float32."""
    N, C, H, W = x_nchw.shape
    S = H * W
    assert C % GROUPS == 0, "GroupNorm(32, C) requires C % 32 == 0"
    gs = C // GROUPS

    gamma, beta, w_in, b_in, w_out, b_out = (
        params["gamma"], params["beta"], params["w_in"], params["b_in"],
        params["w_out"], params["b_out"])

    # NCHW -> (N, S, C): spatial on sublanes, channels on lanes.
    x_nsc = jnp.transpose(x_nchw.reshape(N, C, S), (0, 2, 1)).astype(jnp.float32)

    # Factored GroupNorm matrices: (C, G) reduce (includes 1/(gs*S)) and (G, C) broadcast.
    grp = jnp.arange(C) // gs
    onehot = jax.nn.one_hot(grp, GROUPS, dtype=jnp.float32)      # (C, G)
    reduce_mat = onehot / float(gs * S)                          # (C, G)
    bcast_mat = onehot.T                                         # (G, C)

    # in_proj is Linear(C, 3C): y = x @ W^T + b.  Softmax scale folded into Wq, bq.
    scale = 1.0 / math.sqrt(C)                                   # d_head = C (1 head)
    wq = (w_in[0 * C:1 * C].T * scale).astype(jnp.bfloat16)      # (C, C)
    wk = w_in[1 * C:2 * C].T.astype(jnp.bfloat16)                # (C, C)
    wv = w_in[2 * C:3 * C].T.astype(jnp.bfloat16)                # (C, C)
    bq = (b_in[0 * C:1 * C] * scale).reshape(1, C).astype(jnp.float32)
    bk = b_in[1 * C:2 * C].reshape(1, C).astype(jnp.float32)
    bv = b_in[2 * C:3 * C].reshape(1, C).astype(jnp.float32)

    wo = w_out.T.astype(jnp.bfloat16)                            # (C, C)
    bo = b_out.reshape(1, C).astype(jnp.float32)
    gamma2 = gamma.reshape(1, C).astype(jnp.float32)
    beta2 = beta.reshape(1, C).astype(jnp.float32)

    # ---- Kernel A: GroupNorm + fused QKV (full-S stats per batch element) ----
    # TODO(synk): for very large S this kernel would need a two-phase stats pass
    # over spatial tiles; the (S,S) scaling problem itself is handled by kernel B.
    qkv_spec = pl.BlockSpec((1, S, C), lambda n: (n, 0, 0))
    q, k, v = pl.pallas_call(
        _gn_qkv_kernel,
        out_shape=tuple(jax.ShapeDtypeStruct((N, S, C), jnp.bfloat16) for _ in range(3)),
        grid_spec=pltpu.PrefetchScalarGridSpec(
            num_scalar_prefetch=0,
            grid=(N,),
            in_specs=[
                pl.BlockSpec((1, S, C), lambda n: (n, 0, 0)),    # x
                _const_spec((C, GROUPS)),                        # group reduce
                _const_spec((GROUPS, C)),                        # group broadcast
                _const_spec((1, C)), _const_spec((1, C)),        # gamma, beta
                _const_spec((C, C)), _const_spec((C, C)), _const_spec((C, C)),  # Wq,Wk,Wv
                _const_spec((1, C)), _const_spec((1, C)), _const_spec((1, C)),  # bq,bk,bv
            ],
            out_specs=(qkv_spec, qkv_spec, qkv_spec),
        ),
        compiler_params=pltpu.CompilerParams(
            dimension_semantics=("parallel",),
            vmem_limit_bytes=VMEM_LIMIT),
    )(x_nsc, reduce_mat, bcast_mat, gamma2, beta2, wq, wk, wv, bq, bk, bv)

    # ---- Kernel B: tiled flash attention + out_proj + residual ----
    tq = _pick_tile(S)
    tk = _pick_tile(S)
    nq, nk = S // tq, S // tk

    out_nsc = pl.pallas_call(
        _flash_attn_kernel,
        out_shape=jax.ShapeDtypeStruct((N, S, C), jnp.float32),
        grid_spec=pltpu.PrefetchScalarGridSpec(
            num_scalar_prefetch=0,
            grid=(N, nq, nk),
            in_specs=[
                pl.BlockSpec((1, tq, C), lambda n, i, j: (n, i, 0)),  # q tile
                pl.BlockSpec((1, tk, C), lambda n, i, j: (n, j, 0)),  # k tile
                pl.BlockSpec((1, tk, C), lambda n, i, j: (n, j, 0)),  # v tile
                pl.BlockSpec((1, tq, C), lambda n, i, j: (n, i, 0)),  # residual tile
                _const_spec((C, C)),                                  # Wo
                _const_spec((1, C)),                                  # bo
            ],
            out_specs=pl.BlockSpec((1, tq, C), lambda n, i, j: (n, i, 0)),
            scratch_shapes=[
                pltpu.VMEM((tq, 1), jnp.float32),    # running max
                pltpu.VMEM((tq, 1), jnp.float32),    # running sum
                pltpu.VMEM((tq, C), jnp.float32),    # output accumulator
            ]),
        compiler_params=pltpu.CompilerParams(
            dimension_semantics=("parallel", "parallel", "arbitrary"),
            vmem_limit_bytes=VMEM_LIMIT),
    )(q, k, v, x_nsc, wo, bo)

    # (N, S, C) -> NCHW
    return jnp.transpose(out_nsc, (0, 2, 1)).reshape(N, C, H, W)


# --------------------------------------------------------------------------
# Pure-JAX reference (mirror of the PyTorch forward) for verification.
# --------------------------------------------------------------------------
def _reference(x, params):
    N, C, H, W = x.shape
    gs = C // GROUPS
    gamma, beta, w_in, b_in, w_out, b_out = (
        params["gamma"], params["beta"], params["w_in"], params["b_in"],
        params["w_out"], params["b_out"])

    xg = x.reshape(N, GROUPS, gs, H, W)
    mean = xg.mean(axis=(2, 3, 4), keepdims=True)
    var = xg.var(axis=(2, 3, 4), keepdims=True)
    xn = (xg - mean) / jnp.sqrt(var + EPS)
    xn = xn.reshape(N, C, H, W) * gamma[None, :, None, None] + beta[None, :, None, None]

    xs = jnp.transpose(xn.reshape(N, C, H * W), (0, 2, 1))          # (N, S, C)
    qkv = xs @ w_in.T + b_in
    q, k, v = jnp.split(qkv, 3, axis=-1)
    w = (q @ jnp.transpose(k, (0, 2, 1))) / math.sqrt(C)
    w = jax.nn.softmax(w, axis=-1)
    out = w @ v
    out = out @ w_out.T + b_out
    out = jnp.transpose(out, (0, 2, 1)).reshape(N, C, H, W)
    return out + x


if __name__ == "__main__":
    N, C, H, W = 2, 64, 8, 8  # C must be a multiple of 32 for GroupNorm(32, C)

    key = jax.random.PRNGKey(0)
    k_x, k_g, k_b, k_wi, k_bi, k_wo, k_bo = jax.random.split(key, 7)

    x = jax.random.normal(k_x, (N, C, H, W), dtype=jnp.float32)
    params = {
        "gamma": 1.0 + 0.1 * jax.random.normal(k_g, (C,), dtype=jnp.float32),
        "beta": 0.1 * jax.random.normal(k_b, (C,), dtype=jnp.float32),
        "w_in": 0.05 * jax.random.normal(k_wi, (3 * C, C), dtype=jnp.float32),
        "b_in": 0.05 * jax.random.normal(k_bi, (3 * C,), dtype=jnp.float32),
        "w_out": 0.05 * jax.random.normal(k_wo, (C, C), dtype=jnp.float32),
        "b_out": 0.05 * jax.random.normal(k_bo, (C,), dtype=jnp.float32),
    }

    out = jax.block_until_ready(vae_attention_block(x, params))
    ref = jax.block_until_ready(_reference(x, params))

    assert out.shape == (N, C, H, W)
    # bf16 MXU operands (f32 accumulation) vs a pure-f32 reference -> relaxed tolerance.
    assert jnp.allclose(out, ref, atol=2e-2, rtol=2e-2), \
        f"max abs err {jnp.max(jnp.abs(out - ref))}"
    print("KERNEL_OK")
</pallas_src>

<mosaic_0001>
module attributes {stable_mosaic.version = 11 : i64} {
  func.func @_gn_qkv_kernel(%arg0: i32, %arg1: memref<1x64x64xf32, #tpu.memory_space<vmem>>, %arg2: memref<64x32xf32, #tpu.memory_space<vmem>>, %arg3: memref<32x64xf32, #tpu.memory_space<vmem>>, %arg4: memref<1x64xf32, #tpu.memory_space<vmem>>, %arg5: memref<1x64xf32, #tpu.memory_space<vmem>>, %arg6: memref<64x64xbf16, #tpu.memory_space<vmem>>, %arg7: memref<64x64xbf16, #tpu.memory_space<vmem>>, %arg8: memref<64x64xbf16, #tpu.memory_space<vmem>>, %arg9: memref<1x64xf32, #tpu.memory_space<vmem>>, %arg10: memref<1x64xf32, #tpu.memory_space<vmem>>, %arg11: memref<1x64xf32, #tpu.memory_space<vmem>>, %arg12: memref<1x64x64xbf16, #tpu.memory_space<vmem>>, %arg13: memref<1x64x64xbf16, #tpu.memory_space<vmem>>, %arg14: memref<1x64x64xbf16, #tpu.memory_space<vmem>>) attributes {dimension_semantics = [#tpu.dimension_semantics<parallel>], iteration_bounds = array<i64: 2>, scalar_prefetch = 0 : i64, scratch_operands = 0 : i64, tpu.core_type = #tpu.core_type<tc>, window_params = [{transform_indices = @transform_0, window_bounds = array<i64: 1, 64, 64>}, {pipeline_mode = #tpu.pipeline_mode<synchronous>, transform_indices = @transform_1, window_bounds = array<i64: 64, 32>}, {pipeline_mode = #tpu.pipeline_mode<synchronous>, transform_indices = @transform_2, window_bounds = array<i64: 32, 64>}, {pipeline_mode = #tpu.pipeline_mode<synchronous>, transform_indices = @transform_3, window_bounds = array<i64: 1, 64>}, {pipeline_mode = #tpu.pipeline_mode<synchronous>, transform_indices = @transform_4, window_bounds = array<i64: 1, 64>}, {pipeline_mode = #tpu.pipeline_mode<synchronous>, transform_indices = @transform_5, window_bounds = array<i64: 64, 64>}, {pipeline_mode = #tpu.pipeline_mode<synchronous>, transform_indices = @transform_6, window_bounds = array<i64: 64, 64>}, {pipeline_mode = #tpu.pipeline_mode<synchronous>, transform_indices = @transform_7, window_bounds = array<i64: 64, 64>}, {pipeline_mode = #tpu.pipeline_mode<synchronous>, transform_indices = @transform_8, window_bounds = array<i64: 1, 64>}, {pipeline_mode = #tpu.pipeline_mode<synchronous>, transform_indices = @transform_9, window_bounds = array<i64: 1, 64>}, {pipeline_mode = #tpu.pipeline_mode<synchronous>, transform_indices = @transform_10, window_bounds = array<i64: 1, 64>}, {transform_indices = @transform_11, window_bounds = array<i64: 1, 64, 64>}, {transform_indices = @transform_12, window_bounds = array<i64: 1, 64, 64>}, {transform_indices = @transform_13, window_bounds = array<i64: 1, 64, 64>}]} {
    %c0 = arith.constant 0 : index
    %c0_0 = arith.constant 0 : index
    %c0_1 = arith.constant 0 : index
    %0 = vector.load %arg1[%c0, %c0_0, %c0_1] : memref<1x64x64xf32, #tpu.memory_space<vmem>>, vector<1x64x64xf32>
    %1 = vector.shape_cast %0 : vector<1x64x64xf32> to vector<64x64xf32>
    %cst = arith.constant dense<0.000000e+00> : vector<64xf32>
    %2 = vector.multi_reduction <add>, %1, %cst [0] : vector<64x64xf32> to vector<64xf32>
    %3 = vector.shape_cast %2 : vector<64xf32> to vector<1x64xf32>
    %c0_2 = arith.constant 0 : index
    %c0_3 = arith.constant 0 : index
    %4 = vector.load %arg2[%c0_2, %c0_3] : memref<64x32xf32, #tpu.memory_space<vmem>>, vector<64x32xf32>
    %cst_4 = arith.constant dense<0.000000e+00> : vector<1x32xf32>
    %5 = tpu.matmul %3, %4, %cst_4 {dimension_numbers = #tpu.dot_dimension_numbers<[1], [0], [0], [1], [0, 0, 1, 1], [], []>} : vector<1x64xf32>, vector<64x32xf32>, vector<1x32xf32> -> vector<1x32xf32>
    %c0_5 = arith.constant 0 : index
    %c0_6 = arith.constant 0 : index
    %6 = vector.load %arg3[%c0_5, %c0_6] : memref<32x64xf32, #tpu.memory_space<vmem>>, vector<32x64xf32>
    %cst_7 = arith.constant dense<0.000000e+00> : vector<1x64xf32>
    %7 = tpu.matmul %5, %6, %cst_7 {dimension_numbers = #tpu.dot_dimension_numbers<[1], [0], [0], [1], [0, 0, 1, 1], [], []>} : vector<1x32xf32>, vector<32x64xf32>, vector<1x64xf32> -> vector<1x64xf32>
    %8 = vector.broadcast %7 : vector<1x64xf32> to vector<64x64xf32>
    %9 = arith.subf %1, %8 : vector<64x64xf32>
    %10 = arith.mulf %9, %9 : vector<64x64xf32>
    %cst_8 = arith.constant dense<0.000000e+00> : vector<64xf32>
    %11 = vector.multi_reduction <add>, %10, %cst_8 [0] : vector<64x64xf32> to vector<64xf32>
    %12 = vector.shape_cast %11 : vector<64xf32> to vector<1x64xf32>
    %c0_9 = arith.constant 0 : index
    %c0_10 = arith.constant 0 : index
    %13 = vector.load %arg2[%c0_9, %c0_10] : memref<64x32xf32, #tpu.memory_space<vmem>>, vector<64x32xf32>
    %cst_11 = arith.constant dense<0.000000e+00> : vector<1x32xf32>
    %14 = tpu.matmul %12, %13, %cst_11 {dimension_numbers = #tpu.dot_dimension_numbers<[1], [0], [0], [1], [0, 0, 1, 1], [], []>} : vector<1x64xf32>, vector<64x32xf32>, vector<1x32xf32> -> vector<1x32xf32>
    %c0_12 = arith.constant 0 : index
    %c0_13 = arith.constant 0 : index
    %15 = vector.load %arg3[%c0_12, %c0_13] : memref<32x64xf32, #tpu.memory_space<vmem>>, vector<32x64xf32>
    %cst_14 = arith.constant dense<0.000000e+00> : vector<1x64xf32>
    %16 = tpu.matmul %14, %15, %cst_14 {dimension_numbers = #tpu.dot_dimension_numbers<[1], [0], [0], [1], [0, 0, 1, 1], [], []>} : vector<1x32xf32>, vector<32x64xf32>, vector<1x64xf32> -> vector<1x64xf32>
    %cst_15 = arith.constant 9.99999974E-6 : f32
    %17 = vector.broadcast %cst_15 : f32 to vector<1x64xf32>
    %18 = arith.addf %16, %17 : vector<1x64xf32>
    %19 = math.rsqrt %18 : vector<1x64xf32>
    %c0_16 = arith.constant 0 : index
    %c0_17 = arith.constant 0 : index
    %20 = vector.load %arg4[%c0_16, %c0_17] : memref<1x64xf32, #tpu.memory_space<vmem>>, vector<1x64xf32>
    %21 = arith.mulf %19, %20 : vector<1x64xf32>
    %22 = vector.broadcast %21 : vector<1x64xf32> to vector<64x64xf32>
    %23 = arith.mulf %9, %22 : vector<64x64xf32>
    %c0_18 = arith.constant 0 : index
    %c0_19 = arith.constant 0 : index
    %24 = vector.load %arg5[%c0_18, %c0_19] : memref<1x64xf32, #tpu.memory_space<vmem>>, vector<1x64xf32>
    %25 = vector.broadcast %24 : vector<1x64xf32> to vector<64x64xf32>
    %26 = arith.addf %23, %25 : vector<64x64xf32>
    %27 = arith.truncf %26 : vector<64x64xf32> to vector<64x64xbf16>
    %c0_20 = arith.constant 0 : index
    %c0_21 = arith.constant 0 : index
    %28 = vector.load %arg6[%c0_20, %c0_21] : memref<64x64xbf16, #tpu.memory_space<vmem>>, vector<64x64xbf16>
    %cst_22 = arith.constant dense<0.000000e+00> : vector<64x64xf32>
    %29 = tpu.matmul %27, %28, %cst_22 {dimension_numbers = #tpu.dot_dimension_numbers<[1], [0], [0], [1], [0, 0, 1, 1], [], []>} : vector<64x64xbf16>, vector<64x64xbf16>, vector<64x64xf32> -> vector<64x64xf32>
    %c0_23 = arith.constant 0 : index
    %c0_24 = arith.constant 0 : index
    %30 = vector.load %arg9[%c0_23, %c0_24] : memref<1x64xf32, #tpu.memory_space<vmem>>, vector<1x64xf32>
    %31 = vector.broadcast %30 : vector<1x64xf32> to vector<64x64xf32>
    %32 = arith.addf %29, %31 : vector<64x64xf32>
    %33 = arith.truncf %32 : vector<64x64xf32> to vector<64x64xbf16>
    %c0_25 = arith.constant 0 : index
    %c0_26 = arith.constant 0 : index
    %c0_27 = arith.constant 0 : index
    %34 = vector.load %arg12[%c0_25, %c0_26, %c0_27] : memref<1x64x64xbf16, #tpu.memory_space<vmem>>, vector<1x64x64xbf16>
    %35 = vector.shape_cast %34 : vector<1x64x64xbf16> to vector<64x64xbf16>
    %36 = vector.shape_cast %33 : vector<64x64xbf16> to vector<1x64x64xbf16>
    tpu.vector_store %arg12[%c0_25, %c0_26, %c0_27], %36 {strides = array<i32>} : memref<1x64x64xbf16, #tpu.memory_space<vmem>>, vector<1x64x64xbf16>,
    %c0_28 = arith.constant 0 : index
    %c0_29 = arith.constant 0 : index
    %37 = vector.load %arg7[%c0_28, %c0_29] : memref<64x64xbf16, #tpu.memory_space<vmem>>, vector<64x64xbf16>
    %cst_30 = arith.constant dense<0.000000e+00> : vector<64x64xf32>
    %38 = tpu.matmul %27, %37, %cst_30 {dimension_numbers = #tpu.dot_dimension_numbers<[1], [0], [0], [1], [0, 0, 1, 1], [], []>} : vector<64x64xbf16>, vector<64x64xbf16>, vector<64x64xf32> -> vector<64x64xf32>
    %c0_31 = arith.constant 0 : index
    %c0_32 = arith.constant 0 : index
    %39 = vector.load %arg10[%c0_31, %c0_32] : memref<1x64xf32, #tpu.memory_space<vmem>>, vector<1x64xf32>
    %40 = vector.broadcast %39 : vector<1x64xf32> to vector<64x64xf32>
    %41 = arith.addf %38, %40 : vector<64x64xf32>
    %42 = arith.truncf %41 : vector<64x64xf32> to vector<64x64xbf16>
    %c0_33 = arith.constant 0 : index
    %c0_34 = arith.constant 0 : index
    %c0_35 = arith.constant 0 : index
    %43 = vector.load %arg13[%c0_33, %c0_34, %c0_35] : memref<1x64x64xbf16, #tpu.memory_space<vmem>>, vector<1x64x64xbf16>
    %44 = vector.shape_cast %43 : vector<1x64x64xbf16> to vector<64x64xbf16>
    %45 = vector.shape_cast %42 : vector<64x64xbf16> to vector<1x64x64xbf16>
    tpu.vector_store %arg13[%c0_33, %c0_34, %c0_35], %45 {strides = array<i32>} : memref<1x64x64xbf16, #tpu.memory_space<vmem>>, vector<1x64x64xbf16>,
    %c0_36 = arith.constant 0 : index
    %c0_37 = arith.constant 0 : index
    %46 = vector.load %arg8[%c0_36, %c0_37] : memref<64x64xbf16, #tpu.memory_space<vmem>>, vector<64x64xbf16>
    %cst_38 = arith.constant dense<0.000000e+00> : vector<64x64xf32>
    %47 = tpu.matmul %27, %46, %cst_38 {dimension_numbers = #tpu.dot_dimension_numbers<[1], [0], [0], [1], [0, 0, 1, 1], [], []>} : vector<64x64xbf16>, vector<64x64xbf16>, vector<64x64xf32> -> vector<64x64xf32>
    %c0_39 = arith.constant 0 : index
    %c0_40 = arith.constant 0 : index
    %48 = vector.load %arg11[%c0_39, %c0_40] : memref<1x64xf32, #tpu.memory_space<vmem>>, vector<1x64xf32>
    %49 = vector.broadcast %48 : vector<1x64xf32> to vector<64x64xf32>
    %50 = arith.addf %47, %49 : vector<64x64xf32>
    %51 = arith.truncf %50 : vector<64x64xf32> to vector<64x64xbf16>
    %c0_41 = arith.constant 0 : index
    %c0_42 = arith.constant 0 : index
    %c0_43 = arith.constant 0 : index
    %52 = vector.load %arg14[%c0_41, %c0_42, %c0_43] : memref<1x64x64xbf16, #tpu.memory_space<vmem>>, vector<1x64x64xbf16>
    %53 = vector.shape_cast %52 : vector<1x64x64xbf16> to vector<64x64xbf16>
    %54 = vector.shape_cast %51 : vector<64x64xbf16> to vector<1x64x64xbf16>
    tpu.vector_store %arg14[%c0_41, %c0_42, %c0_43], %54 {strides = array<i32>} : memref<1x64x64xbf16, #tpu.memory_space<vmem>>, vector<1x64x64xbf16>,
    return
  }
  func.func @transform_0(%arg0: i32) -> (i32, i32, i32) {
    %c0_i32 = arith.constant 0 : i32
    %c0_i32_0 = arith.constant 0 : i32
    %c0_i32_1 = arith.constant 0 : i32
    return %arg0, %c0_i32, %c0_i32_0 : i32, i32, i32
  }
  func.func @transform_1(%arg0: i32) -> (i32, i32) {
    %c0_i32 = arith.constant 0 : i32
    %c0_i32_0 = arith.constant 0 : i32
    %c0_i32_1 = arith.constant 0 : i32
    return %c0_i32, %c0_i32_0 : i32, i32
  }
  func.func @transform_2(%arg0: i32) -> (i32, i32) {
    %c0_i32 = arith.constant 0 : i32
    %c0_i32_0 = arith.constant 0 : i32
    %c0_i32_1 = arith.constant 0 : i32
    return %c0_i32, %c0_i32_0 : i32, i32
  }
  func.func @transform_3(%arg0: i32) -> (i32, i32) {
    %c0_i32 = arith.constant 0 : i32
    %c0_i32_0 = arith.constant 0 : i32
    %c0_i32_1 = arith.constant 0 : i32
    return %c0_i32, %c0_i32_0 : i32, i32
  }
  func.func @transform_4(%arg0: i32) -> (i32, i32) {
    %c0_i32 = arith.constant 0 : i32
    %c0_i32_0 = arith.constant 0 : i32
    %c0_i32_1 = arith.constant 0 : i32
    return %c0_i32, %c0_i32_0 : i32, i32
  }
  func.func @transform_5(%arg0: i32) -> (i32, i32) {
    %c0_i32 = arith.constant 0 : i32
    %c0_i32_0 = arith.constant 0 : i32
    %c0_i32_1 = arith.constant 0 : i32
    return %c0_i32, %c0_i32_0 : i32, i32
  }
  func.func @transform_6(%arg0: i32) -> (i32, i32) {
    %c0_i32 = arith.constant 0 : i32
    %c0_i32_0 = arith.constant 0 : i32
    %c0_i32_1 = arith.constant 0 : i32
    return %c0_i32, %c0_i32_0 : i32, i32
  }
  func.func @transform_7(%arg0: i32) -> (i32, i32) {
    %c0_i32 = arith.constant 0 : i32
    %c0_i32_0 = arith.constant 0 : i32
    %c0_i32_1 = arith.constant 0 : i32
    return %c0_i32, %c0_i32_0 : i32, i32
  }
  func.func @transform_8(%arg0: i32) -> (i32, i32) {
    %c0_i32 = arith.constant 0 : i32
    %c0_i32_0 = arith.constant 0 : i32
    %c0_i32_1 = arith.constant 0 : i32
    return %c0_i32, %c0_i32_0 : i32, i32
  }
  func.func @transform_9(%arg0: i32) -> (i32, i32) {
    %c0_i32 = arith.constant 0 : i32
    %c0_i32_0 = arith.constant 0 : i32
    %c0_i32_1 = arith.constant 0 : i32
    return %c0_i32, %c0_i32_0 : i32, i32
  }
  func.func @transform_10(%arg0: i32) -> (i32, i32) {
    %c0_i32 = arith.constant 0 : i32
    %c0_i32_0 = arith.constant 0 : i32
    %c0_i32_1 = arith.constant 0 : i32
    return %c0_i32, %c0_i32_0 : i32, i32
  }
  func.func @transform_11(%arg0: i32) -> (i32, i32, i32) {
    %c0_i32 = arith.constant 0 : i32
    %c0_i32_0 = arith.constant 0 : i32
    %c0_i32_1 = arith.constant 0 : i32
    return %arg0, %c0_i32, %c0_i32_0 : i32, i32, i32
  }
  func.func @transform_12(%arg0: i32) -> (i32, i32, i32) {
    %c0_i32 = arith.constant 0 : i32
    %c0_i32_0 = arith.constant 0 : i32
    %c0_i32_1 = arith.constant 0 : i32
    return %arg0, %c0_i32, %c0_i32_0 : i32, i32, i32
  }
  func.func @transform_13(%arg0: i32) -> (i32, i32, i32) {
    %c0_i32 = arith.constant 0 : i32
    %c0_i32_0 = arith.constant 0 : i32
    %c0_i32_1 = arith.constant 0 : i32
    return %arg0, %c0_i32, %c0_i32_0 : i32, i32, i32
  }
}

</mosaic_0001>

<llo_original>
// kernel: tpu_custom_call.1
$region0: #{tpu_custom_call.1}
  #allocation0 [shape = 'u32[]', space=smem, size = 0x4, offset = 0x4, fixed_abs, tag = 'smem constant byte address 0x4 - core index']
  #allocation1 [shape = 'u32[144,128]{1,0:T(1,128)}', space=vmem, size = 0x12000, scoped, tag = 'internal scratch']
  %s0 = inlined_call_operand.hbm [shape: f32[2,64,64], index: 0, kind: input, shape index: {}]
  %s1 = inlined_call_operand.vmem [shape: f32[64,32], index: 1, kind: input, shape index: {}]
  %s2 = inlined_call_operand.vmem [shape: f32[32,64], index: 2, kind: input, shape index: {}]
  %s3 = inlined_call_operand.vmem [shape: f32[1,64], index: 3, kind: input, shape index: {}]
  %s4 = inlined_call_operand.vmem [shape: f32[1,64], index: 4, kind: input, shape index: {}]
  %s5 = inlined_call_operand.vmem [shape: bf16[64,64], index: 5, kind: input, shape index: {}]
  %s6 = inlined_call_operand.vmem [shape: bf16[64,64], index: 6, kind: input, shape index: {}]
  %s7 = inlined_call_operand.hbm [shape: bf16[64,64], index: 7, kind: input, shape index: {}]
  %s8 = inlined_call_operand.vmem [shape: f32[1,64], index: 8, kind: input, shape index: {}]
  %s9 = inlined_call_operand.vmem [shape: f32[1,64], index: 9, kind: input, shape index: {}]
  %s10 = inlined_call_operand.vmem [shape: f32[1,64], index: 10, kind: input, shape index: {}]
  %s11 = inlined_call_operand.hbm [shape: bf16[2,64,64], index: 11, kind: output, shape index: {0}]
  %s12 = inlined_call_operand.hbm [shape: bf16[2,64,64], index: 12, kind: output, shape index: {1}]
  %s13 = inlined_call_operand.hbm [shape: bf16[2,64,64], index: 13, kind: output, shape index: {2}]
  %14 = xla_tuple %s11, %s12, %s13
  %s15 = sld [smem:[#allocation0]]
  $region101: #{tpu_custom_call.1} parent=0
    _
  %s17 = ssub.s32 1, %s15
  %s18 = scalar_select 0, %s17, %s15
  $region1: #{tpu_custom_call.1} parent=0
    #allocation2 [shape = 'u8[65536]{0}', space=vmem, size = 0x10000, scoped, tag = 'input window, operand 0']
    #allocation3 [shape = 's32[2]{0}', space=sflag, size = 0x8, scoped, tag = 'scoped memory for tpu_custom_call.1']
    #allocation4 [shape = 's32[2]{0}', space=sflag, size = 0x8, scoped, tag = 'scoped memory for tpu_custom_call.1']
    #allocation5 [shape = 'u8[16384]{0}', space=vmem, size = 0x4000, scoped, tag = 'input window, operand 7, single buffered']
    #allocation6 [shape = 's32[1]{0}', space=sflag, size = 0x4, scoped, tag = 'scoped memory for tpu_custom_call.1']
    #allocation7 [shape = 'u8[32768]{0}', space=vmem, size = 0x8000, scoped, tag = 'output window, operand 0']
    #allocation8 [shape = 'u8[32768]{0}', space=vmem, size = 0x8000, scoped, tag = 'output window, operand 1']
    #allocation9 [shape = 's32[2]{0}', space=sflag, size = 0x8, scoped, tag = 'scoped memory for tpu_custom_call.1']
    #allocation10 [shape = 'u8[32768]{0}', space=vmem, size = 0x8000, scoped, tag = 'output window, operand 2']
    %19 = vsyncpa [#allocation3], 0
    %s20 = scalar_lea.sflag [#allocation3], 1
    %21 = vsyncpa %s20, 0
    %22 = vsyncpa [#allocation6], 0
    %23 = vsyncpa [#allocation4], 0
    %s24 = scalar_lea.sflag [#allocation4], 1
    %25 = vsyncpa %s24, 0
    %26 = vsyncpa [#allocation9], 0
    %s27 = scalar_lea.sflag [#allocation9], 1
    %28 = vsyncpa %s27, 0
    loop: start=0, step=1, limit=4
    $region2: #{tpu_custom_call.1} parent=1 // loop_pre_header
      _
    $region3: #{tpu_custom_call.1} parent=1 // loop_header
      %s30 = sphi 0, %s34
      %p31 = scmp.ge.s32.totalorder %s30, 4
      %s40 = sphi 0, %s42
      %s43 = sphi 0, %s40
      %s44 = sphi 0, %s43
      %s60 = sphi 0, %s44
      %s64 = sphi 0, %s64
      %s66 = sphi 0, %s64
      %s67 = sphi 0, %s66
      %s81 = sphi 0, %s67
      %s85 = sphi 0, %s85
      %s87 = sphi 0, %s85
      %s88 = sphi 0, %s87
      %s102 = sphi 0, %s88
      %s106 = sphi 0, %s106
      %s108 = sphi 0, %s106
      %s109 = sphi 0, %s108
      %s123 = sphi 0, %s109
      %s127 = sphi 0, %s127
      %s129 = sphi 0, %s127
      %s130 = sphi 0, %s129
      %s144 = sphi 0, %s130
      %s148 = sphi 0, %s148
      %s150 = sphi 0, %s148
      %s151 = sphi 0, %s150
      %s165 = sphi 0, %s151
      %s169 = sphi 0, %s169
      %s171 = sphi 0, %s169
      %s172 = sphi 0, %s171
      %s186 = sphi 0, %s172
      %s190 = sphi 0, %s190
      %s192 = sphi 0, %s190
      %s193 = sphi 0, %s192
      %s207 = sphi 0, %s193
      %s211 = sphi 0, %s211
      %s213 = sphi 0, %s211
      %s214 = sphi 0, %s213
      %s228 = sphi 0, %s214
      %s232 = sphi 0, %s232
      %s234 = sphi 0, %s232
      %s235 = sphi 0, %s234
      %s249 = sphi 0, %s235
      %s253 = sphi 0, %s253
      %s255 = sphi 0, %s253
      %s256 = sphi 0, %s255
      %s270 = sphi 0, %s256
      %s276 = sphi 0, %s278
      %s279 = sphi 0, %s276
      %s280 = sphi 0, %s279
      %s296 = sphi 0, %s280
      %s302 = sphi 0, %s304
      %s305 = sphi 0, %s302
      %s306 = sphi 0, %s305
      %s322 = sphi 0, %s306
      %s328 = sphi 0, %s330
      %s331 = sphi 0, %s328
      %s332 = sphi 0, %s331
      %s348 = sphi 0, %s332
    $region4: #{tpu_custom_call.1} parent=1 // loop_header_branch
      %33 = sbr.rel (%p31) target = $region8
    $region5: #{tpu_custom_call.1} parent=1 // loop_body
      %s35 = ssub.s32 %s30, 1
      %s36 = ssub.s32 %s30, 2
      %s37 = sadd.s32 %s30, 1
      %s38 = ssub.s32 %s30, %s37
      %p39 = scmp.eq.s32.totalorder %s38, 0
      %s41 = sadd.s32 %s40, 1
      %s42 = scalar_select %p39, %s40, %s41
      %p45 = pneg %p39
      %p46 = scmp.eq.s32.totalorder %s30, 1
      %p47 = por %p45, %p46
      %p48 = scmp.ne.s32.totalorder %s40, %s43
      %p49 = scmp.eq.s32.totalorder %s30, 0
      %p50 = por %p48, %p49
      %p51 = scmp.ne.s32.totalorder %s40, %s43
      %p52 = scmp.eq.s32.totalorder %s35, 1
      %p53 = por %p51, %p52
      %p54 = scmp.ne.s32.totalorder %s43, %s44
      %p55 = scmp.eq.s32.totalorder %s35, 0
      %p56 = por %p54, %p55
      %p57 = scmp.ne.s32.totalorder %s43, %s44
      %p58 = scmp.eq.s32.totalorder %s36, 1
      %p59 = por %p57, %p58
      %p61 = scmp.ne.s32.totalorder %s44, %s60
      %p62 = scmp.eq.s32.totalorder %s36, 0
      %p63 = por %p61, %p62
      %s65 = sadd.s32 %s64, 1
      %p68 = scmp.eq.s32.totalorder %s30, 1
      %p69 = scmp.ne.s32.totalorder %s64, %s66
      %p70 = scmp.eq.s32.totalorder %s30, 0
      %p71 = por %p69, %p70
      %p72 = scmp.ne.s32.totalorder %s64, %s66
      %p73 = scmp.eq.s32.totalorder %s35, 1
      %p74 = por %p72, %p73
      %p75 = scmp.ne.s32.totalorder %s66, %s67
      %p76 = scmp.eq.s32.totalorder %s35, 0
      %p77 = por %p75, %p76
      %p78 = scmp.ne.s32.totalorder %s66, %s67
      %p79 = scmp.eq.s32.totalorder %s36, 1
      %p80 = por %p78, %p79
      %p82 = scmp.ne.s32.totalorder %s67, %s81
      %p83 = scmp.eq.s32.totalorder %s36, 0
      %p84 = por %p82, %p83
      %s86 = sadd.s32 %s85, 1
      %p89 = scmp.eq.s32.totalorder %s30, 1
      %p90 = scmp.ne.s32.totalorder %s85, %s87
      %p91 = scmp.eq.s32.totalorder %s30, 0
      %p92 = por %p90, %p91
      %p93 = scmp.ne.s32.totalorder %s85, %s87
      %p94 = scmp.eq.s32.totalorder %s35, 1
      %p95 = por %p93, %p94
      %p96 = scmp.ne.s32.totalorder %s87, %s88
      %p97 = scmp.eq.s32.totalorder %s35, 0
      %p98 = por %p96, %p97
      %p99 = scmp.ne.s32.totalorder %s87, %s88
      %p100 = scmp.eq.s32.totalorder %s36, 1
      %p101 = por %p99, %p100
      %p103 = scmp.ne.s32.totalorder %s88, %s102
      %p104 = scmp.eq.s32.totalorder %s36, 0
      %p105 = por %p103, %p104
      %s107 = sadd.s32 %s106, 1
      %p110 = scmp.eq.s32.totalorder %s30, 1
      %p111 = scmp.ne.s32.totalorder %s106, %s108
      %p112 = scmp.eq.s32.totalorder %s30, 0
      %p113 = por %p111, %p112
      %p114 = scmp.ne.s32.totalorder %s106, %s108
      %p115 = scmp.eq.s32.totalorder %s35, 1
      %p116 = por %p114, %p115
      %p117 = scmp.ne.s32.totalorder %s108, %s109
      %p118 = scmp.eq.s32.totalorder %s35, 0
      %p119 = por %p117, %p118
      %p120 = scmp.ne.s32.totalorder %s108, %s109
      %p121 = scmp.eq.s32.totalorder %s36, 1
      %p122 = por %p120, %p121
      %p124 = scmp.ne.s32.totalorder %s109, %s123
      %p125 = scmp.eq.s32.totalorder %s36, 0
      %p126 = por %p124, %p125
      %s128 = sadd.s32 %s127, 1
      %p131 = scmp.eq.s32.totalorder %s30, 1
      %p132 = scmp.ne.s32.totalorder %s127, %s129
      %p133 = scmp.eq.s32.totalorder %s30, 0
      %p134 = por %p132, %p133
      %p135 = scmp.ne.s32.totalorder %s127, %s129
      %p136 = scmp.eq.s32.totalorder %s35, 1
      %p137 = por %p135, %p136
      %p138 = scmp.ne.s32.totalorder %s129, %s130
      %p139 = scmp.eq.s32.totalorder %s35, 0
      %p140 = por %p138, %p139
      %p141 = scmp.ne.s32.totalorder %s129, %s130
      %p142 = scmp.eq.s32.totalorder %s36, 1
      %p143 = por %p141, %p142
      %p145 = scmp.ne.s32.totalorder %s130, %s144
      %p146 = scmp.eq.s32.totalorder %s36, 0
      %p147 = por %p145, %p146
      %s149 = sadd.s32 %s148, 1
      %p152 = scmp.eq.s32.totalorder %s30, 1
      %p153 = scmp.ne.s32.totalorder %s148, %s150
      %p154 = scmp.eq.s32.totalorder %s30, 0
      %p155 = por %p153, %p154
      %p156 = scmp.ne.s32.totalorder %s148, %s150
      %p157 = scmp.eq.s32.totalorder %s35, 1
      %p158 = por %p156, %p157
      %p159 = scmp.ne.s32.totalorder %s150, %s151
      %p160 = scmp.eq.s32.totalorder %s35, 0
      %p161 = por %p159, %p160
      %p162 = scmp.ne.s32.totalorder %s150, %s151
      %p163 = scmp.eq.s32.totalorder %s36, 1
      %p164 = por %p162, %p163
      %p166 = scmp.ne.s32.totalorder %s151, %s165
      %p167 = scmp.eq.s32.totalorder %s36, 0
      %p168 = por %p166, %p167
      %s170 = sadd.s32 %s169, 1
      %p173 = scmp.eq.s32.totalorder %s30, 1
      %p174 = scmp.ne.s32.totalorder %s169, %s171
      %p175 = scmp.eq.s32.totalorder %s30, 0
      %p176 = por %p174, %p175
      %p177 = scmp.ne.s32.totalorder %s169, %s171
      %p178 = scmp.eq.s32.totalorder %s35, 1
      %p179 = por %p177, %p178
      %p180 = scmp.ne.s32.totalorder %s171, %s172
      %p181 = scmp.eq.s32.totalorder %s35, 0
      %p182 = por %p180, %p181
      %p183 = scmp.ne.s32.totalorder %s171, %s172
      %p184 = scmp.eq.s32.totalorder %s36, 1
      %p185 = por %p183, %p184
      %p187 = scmp.ne.s32.totalorder %s172, %s186
      %p188 = scmp.eq.s32.totalorder %s36, 0
      %p189 = por %p187, %p188
      %s191 = sadd.s32 %s190, 1
      %p194 = scmp.eq.s32.totalorder %s30, 1
      %p195 = scmp.ne.s32.totalorder %s190, %s192
      %p196 = scmp.eq.s32.totalorder %s30, 0
      %p197 = por %p195, %p196
      %p198 = scmp.ne.s32.totalorder %s190, %s192
      %p199 = scmp.eq.s32.totalorder %s35, 1
      %p200 = por %p198, %p199
      %p201 = scmp.ne.s32.totalorder %s192, %s193
      %p202 = scmp.eq.s32.totalorder %s35, 0
      %p203 = por %p201, %p202
      %p204 = scmp.ne.s32.totalorder %s192, %s193
      %p205 = scmp.eq.s32.totalorder %s36, 1
      %p206 = por %p204, %p205
      %p208 = scmp.ne.s32.totalorder %s193, %s207
      %p209 = scmp.eq.s32.totalorder %s36, 0
      %p210 = por %p208, %p209
      %s212 = sadd.s32 %s211, 1
      %p215 = scmp.eq.s32.totalorder %s30, 1
      %p216 = scmp.ne.s32.totalorder %s211, %s213
      %p217 = scmp.eq.s32.totalorder %s30, 0
      %p218 = por %p216, %p217
      %p219 = scmp.ne.s32.totalorder %s211, %s213
      %p220 = scmp.eq.s32.totalorder %s35, 1
      %p221 = por %p219, %p220
      %p222 = scmp.ne.s32.totalorder %s213, %s214
      %p223 = scmp.eq.s32.totalorder %s35, 0
      %p224 = por %p222, %p223
      %p225 = scmp.ne.s32.totalorder %s213, %s214
      %p226 = scmp.eq.s32.totalorder %s36, 1
      %p227 = por %p225, %p226
      %p229 = scmp.ne.s32.totalorder %s214, %s228
      %p230 = scmp.eq.s32.totalorder %s36, 0
      %p231 = por %p229, %p230
      %s233 = sadd.s32 %s232, 1
      %p236 = scmp.eq.s32.totalorder %s30, 1
      %p237 = scmp.ne.s32.totalorder %s232, %s234
      %p238 = scmp.eq.s32.totalorder %s30, 0
      %p239 = por %p237, %p238
      %p240 = scmp.ne.s32.totalorder %s232, %s234
      %p241 = scmp.eq.s32.totalorder %s35, 1
      %p242 = por %p240, %p241
      %p243 = scmp.ne.s32.totalorder %s234, %s235
      %p244 = scmp.eq.s32.totalorder %s35, 0
      %p245 = por %p243, %p244
      %p246 = scmp.ne.s32.totalorder %s234, %s235
      %p247 = scmp.eq.s32.totalorder %s36, 1
      %p248 = por %p246, %p247
      %p250 = scmp.ne.s32.totalorder %s235, %s249
      %p251 = scmp.eq.s32.totalorder %s36, 0
      %p252 = por %p250, %p251
      %s254 = sadd.s32 %s253, 1
      %p257 = scmp.eq.s32.totalorder %s30, 1
      %p258 = scmp.ne.s32.totalorder %s253, %s255
      %p259 = scmp.eq.s32.totalorder %s30, 0
      %p260 = por %p258, %p259
      %p261 = scmp.ne.s32.totalorder %s253, %s255
      %p262 = scmp.eq.s32.totalorder %s35, 1
      %p263 = por %p261, %p262
      %p264 = scmp.ne.s32.totalorder %s255, %s256
      %p265 = scmp.eq.s32.totalorder %s35, 0
      %p266 = por %p264, %p265
      %p267 = scmp.ne.s32.totalorder %s255, %s256
      %p268 = scmp.eq.s32.totalorder %s36, 1
      %p269 = por %p267, %p268
      %p271 = scmp.ne.s32.totalorder %s256, %s270
      %p272 = scmp.eq.s32.totalorder %s36, 0
      %p273 = por %p271, %p272
      %s274 = ssub.s32 %s30, %s37
      %p275 = scmp.eq.s32.totalorder %s274, 0
      %s277 = sadd.s32 %s276, 1
      %s278 = scalar_select %p275, %s276, %s277
      %p281 = pneg %p275
      %p282 = scmp.eq.s32.totalorder %s30, 1
      %p283 = por %p281, %p282
      %p284 = scmp.ne.s32.totalorder %s276, %s279
      %p285 = scmp.eq.s32.totalorder %s30, 0
      %p286 = por %p284, %p285
      %p287 = scmp.ne.s32.totalorder %s276, %s279
      %p288 = scmp.eq.s32.totalorder %s35, 1
      %p289 = por %p287, %p288
      %p290 = scmp.ne.s32.totalorder %s279, %s280
      %p291 = scmp.eq.s32.totalorder %s35, 0
      %p292 = por %p290, %p291
      %p293 = scmp.ne.s32.totalorder %s279, %s280
      %p294 = scmp.eq.s32.totalorder %s36, 1
      %p295 = por %p293, %p294
      %p297 = scmp.ne.s32.totalorder %s280, %s296
      %p298 = scmp.eq.s32.totalorder %s36, 0
      %p299 = por %p297, %p298
      %s300 = ssub.s32 %s30, %s37
      %p301 = scmp.eq.s32.totalorder %s300, 0
      %s303 = sadd.s32 %s302, 1
      %s304 = scalar_select %p301, %s302, %s303
      %p307 = pneg %p301
      %p308 = scmp.eq.s32.totalorder %s30, 1
      %p309 = por %p307, %p308
      %p310 = scmp.ne.s32.totalorder %s302, %s305
      %p311 = scmp.eq.s32.totalorder %s30, 0
      %p312 = por %p310, %p311
      %p313 = scmp.ne.s32.totalorder %s302, %s305
      %p314 = scmp.eq.s32.totalorder %s35, 1
      %p315 = por %p313, %p314
      %p316 = scmp.ne.s32.totalorder %s305, %s306
      %p317 = scmp.eq.s32.totalorder %s35, 0
      %p318 = por %p316, %p317
      %p319 = scmp.ne.s32.totalorder %s305, %s306
      %p320 = scmp.eq.s32.totalorder %s36, 1
      %p321 = por %p319, %p320
      %p323 = scmp.ne.s32.totalorder %s306, %s322
      %p324 = scmp.eq.s32.totalorder %s36, 0
      %p325 = por %p323, %p324
      %s326 = ssub.s32 %s30, %s37
      %p327 = scmp.eq.s32.totalorder %s326, 0
      %s329 = sadd.s32 %s328, 1
      %s330 = scalar_select %p327, %s328, %s329
      %p333 = pneg %p327
      %p334 = scmp.eq.s32.totalorder %s30, 1
      %p335 = por %p333, %p334
      %p336 = scmp.ne.s32.totalorder %s328, %s331
      %p337 = scmp.eq.s32.totalorder %s30, 0
      %p338 = por %p336, %p337
      %p339 = scmp.ne.s32.totalorder %s328, %s331
      %p340 = scmp.eq.s32.totalorder %s35, 1
      %p341 = por %p339, %p340
      %p342 = scmp.ne.s32.totalorder %s331, %s332
      %p343 = scmp.eq.s32.totalorder %s35, 0
      %p344 = por %p342, %p343
      %p345 = scmp.ne.s32.totalorder %s331, %s332
      %p346 = scmp.eq.s32.totalorder %s36, 1
      %p347 = por %p345, %p346
      %p349 = scmp.ne.s32.totalorder %s332, %s348
      %p350 = scmp.eq.s32.totalorder %s36, 0
      %p351 = por %p349, %p350
      %p352 = scmp.le.s32.totalorder 1, %s30
      %p353 = scmp.lt.s32.totalorder %s30, 3
      %p354 = pnand %p352, %p353
      %p355 = pneg %p354
      // Predicated region
      $region9: #{tpu_custom_call.1} parent=5 // pred_check
        _
      $region10: #{tpu_custom_call.1} parent=5 // pred_check_branch
        %357 = sbr.rel (%p354) target = $region12
      $region11: #{tpu_custom_call.1} parent=5 // pred_region
        %s358 = ssub.s32 %s30, 1
        // Predicated region
        $region13: #{tpu_custom_call.1} parent=11 // pred_check
          %p359 = pneg %p77
        $region14: #{tpu_custom_call.1} parent=11 // pred_check_branch
          %361 = sbr.rel (%p359) target = $region16
        $region15: #{tpu_custom_call.1} parent=11 // pred_region
          _
        $region16: #{tpu_custom_call.1} parent=11 // pred_fallthru
          _
        // Predicated region
        $region17: #{tpu_custom_call.1} parent=11 // pred_check
          %p362 = pneg %p98
        $region18: #{tpu_custom_call.1} parent=11 // pred_check_branch
          %364 = sbr.rel (%p362) target = $region20
        $region19: #{tpu_custom_call.1} parent=11 // pred_region
          _
        $region20: #{tpu_custom_call.1} parent=11 // pred_fallthru
          _
        // Predicated region
        $region21: #{tpu_custom_call.1} parent=11 // pred_check
          %p365 = pneg %p119
        $region22: #{tpu_custom_call.1} parent=11 // pred_check_branch
          %367 = sbr.rel (%p365) target = $region24
        $region23: #{tpu_custom_call.1} parent=11 // pred_region
          _
        $region24: #{tpu_custom_call.1} parent=11 // pred_fallthru
          _
        // Predicated region
        $region25: #{tpu_custom_call.1} parent=11 // pred_check
          %p368 = pneg %p140
        $region26: #{tpu_custom_call.1} parent=11 // pred_check_branch
          %370 = sbr.rel (%p368) target = $region28
        $region27: #{tpu_custom_call.1} parent=11 // pred_region
          _
        $region28: #{tpu_custom_call.1} parent=11 // pred_fallthru
          _
        // Predicated region
        $region29: #{tpu_custom_call.1} parent=11 // pred_check
          %p371 = pneg %p161
        $region30: #{tpu_custom_call.1} parent=11 // pred_check_branch
          %373 = sbr.rel (%p371) target = $region32
        $region31: #{tpu_custom_call.1} parent=11 // pred_region
          _
        $region32: #{tpu_custom_call.1} parent=11 // pred_fallthru
          _
        // Predicated region
        $region33: #{tpu_custom_call.1} parent=11 // pred_check
          %p374 = pneg %p182
        $region34: #{tpu_custom_call.1} parent=11 // pred_check_branch
          %376 = sbr.rel (%p374) target = $region36
        $region35: #{tpu_custom_call.1} parent=11 // pred_region
          _
        $region36: #{tpu_custom_call.1} parent=11 // pred_fallthru
          _
        // Predicated region
        $region37: #{tpu_custom_call.1} parent=11 // pred_check
          %p377 = pneg %p203
        $region38: #{tpu_custom_call.1} parent=11 // pred_check_branch
          %379 = sbr.rel (%p377) target = $region40
        $region39: #{tpu_custom_call.1} parent=11 // pred_region
          %s381 = ssub.s32 512, 512
          %382 = vsyncadd [#allocation6], %s381
          %s383 = sshll.u32 [#allocation5], 4
          %s384 = int_to_ptr.vmem [resolvable:$true] %s383
          %389 = dma.hbm_to_vmem [thread:$0]  %s7, 512, %s384, [#allocation6], 64, 64, 4
        $region40: #{tpu_custom_call.1} parent=11 // pred_fallthru
          _
        // Predicated region
        $region41: #{tpu_custom_call.1} parent=11 // pred_check
          %p390 = pneg %p224
        $region42: #{tpu_custom_call.1} parent=11 // pred_check_branch
          %392 = sbr.rel (%p390) target = $region44
        $region43: #{tpu_custom_call.1} parent=11 // pred_region
          _
        $region44: #{tpu_custom_call.1} parent=11 // pred_fallthru
          _
        // Predicated region
        $region45: #{tpu_custom_call.1} parent=11 // pred_check
          %p393 = pneg %p245
        $region46: #{tpu_custom_call.1} parent=11 // pred_check_branch
          %395 = sbr.rel (%p393) target = $region48
        $region47: #{tpu_custom_call.1} parent=11 // pred_region
          _
        $region48: #{tpu_custom_call.1} parent=11 // pred_fallthru
          _
        // Predicated region
        $region49: #{tpu_custom_call.1} parent=11 // pred_check
          %p396 = pneg %p266
        $region50: #{tpu_custom_call.1} parent=11 // pred_check_branch
          %398 = sbr.rel (%p396) target = $region52
        $region51: #{tpu_custom_call.1} parent=11 // pred_region
          _
        $region52: #{tpu_custom_call.1} parent=11 // pred_fallthru
          _
      $region12: #{tpu_custom_call.1} parent=5 // pred_fallthru
        _
      %p399 = scmp.lt.s32.totalorder %s30, 2
      // Predicated region
      $region53: #{tpu_custom_call.1} parent=5 // pred_check
        %p400 = pneg %p399
      $region54: #{tpu_custom_call.1} parent=5 // pred_check_branch
        %402 = sbr.rel (%p400) target = $region56
      $region55: #{tpu_custom_call.1} parent=5 // pred_region
        // Predicated region
        $region57: #{tpu_custom_call.1} parent=55 // pred_check
          %p403 = pneg %p50
        $region58: #{tpu_custom_call.1} parent=55 // pred_check_branch
          %405 = sbr.rel (%p403) target = $region60
        $region59: #{tpu_custom_call.1} parent=55 // pred_region
          %s406 = sand.u32 %s40, 1
          %s407 = scalar_lea.sflag [#allocation3], %s406
          %s408 = sand.u32 %s40, 1
          %s409 = smul.addr %s408, 64
          %s410 = scalar_lea.vmem [#allocation2], %s409
          %s412 = ssub.s32 1024, 1024
          %413 = vsyncadd %s407, %s412
          %s414 = smul.addr %s30, 8
          %s415 = smul.addr %s414, 128
          %s416 = scalar_lea.hbm %s0, %s415
          %s417 = sshll.u32 %s410, 4
          %s418 = int_to_ptr.vmem [resolvable:$true] %s417
          %423 = dma.hbm_to_vmem [thread:$0]  %s416, 1024, %s418, %s407, 128, 128, 8
        $region60: #{tpu_custom_call.1} parent=55 // pred_fallthru
          _
      $region56: #{tpu_custom_call.1} parent=5 // pred_fallthru
        _
      %p424 = scmp.le.s32.totalorder 1, %s30
      %p425 = scmp.lt.s32.totalorder %s30, 3
      %p426 = pnand %p424, %p425
      %p427 = pneg %p426
      // Predicated region
      $region61: #{tpu_custom_call.1} parent=5 // pred_check
        _
      $region62: #{tpu_custom_call.1} parent=5 // pred_check_branch
        %429 = sbr.rel (%p426) target = $region64
      $region63: #{tpu_custom_call.1} parent=5 // pred_region
        %s430 = ssub.s32 %s30, 1
        %s431 = sand.u32 %s43, 1
        %s432 = scalar_lea.sflag [#allocation3], %s431
        %s433 = sand.u32 %s43, 1
        %s434 = smul.addr %s433, 64
        %s435 = scalar_lea.vmem [#allocation2], %s434
        // Predicated region
        $region65: #{tpu_custom_call.1} parent=63 // pred_check
          %p436 = pneg %p56
        $region66: #{tpu_custom_call.1} parent=63 // pred_check_branch
          %438 = sbr.rel (%p436) target = $region68
        $region67: #{tpu_custom_call.1} parent=63 // pred_region
          %439 = dma.done %s432, 1024
        $region68: #{tpu_custom_call.1} parent=63 // pred_fallthru
          _
        // Predicated region
        $region69: #{tpu_custom_call.1} parent=63 // pred_check
          %p440 = pneg %p203
        $region70: #{tpu_custom_call.1} parent=63 // pred_check_branch
          %442 = sbr.rel (%p440) target = $region72
        $region71: #{tpu_custom_call.1} parent=63 // pred_region
          %443 = dma.done [#allocation6], 512
        $region72: #{tpu_custom_call.1} parent=63 // pred_fallthru
          _
        %s444 = sand.u32 %s43, 1
        %s445 = scalar_lea.sflag [#allocation3], %s444
        %s446 = sand.u32 %s43, 1
        %s447 = smul.addr %s446, 64
        %s448 = scalar_lea.vmem [#allocation2], %s447
        %p449 = pneg %p56
        %p450 = pneg %p53
        %p451 = pneg %p77
        %p452 = pneg %p74
        %p453 = pneg %p98
        %p454 = pneg %p95
        %p455 = pneg %p119
        %p456 = pneg %p116
        %p457 = pneg %p140
        %p458 = pneg %p137
        %p459 = pneg %p161
        %p460 = pneg %p158
        %p461 = pneg %p182
        %p462 = pneg %p179
        %p463 = pneg %p203
        %p464 = pneg %p200
        %p465 = pneg %p224
        %p466 = pneg %p221
        %p467 = pneg %p245
        %p468 = pneg %p242
        %p469 = pneg %p266
        %p470 = pneg %p263
        %p471 = pneg %p292
        %p472 = pneg %p289
        %s473 = sand.u32 %s279, 1
        %s474 = scalar_lea.sflag [#allocation4], %s473
        %s475 = sand.u32 %s279, 1
        %s476 = smul.addr %s475, 32
        %s477 = scalar_lea.vmem [#allocation7], %s476
        %p478 = pneg %p318
        %p479 = pneg %p315
        %s480 = sand.u32 %s35, 1
        %s481 = scalar_lea.sflag [#allocation9], %s480
        %s482 = sand.u32 %s305, 1
        %s483 = smul.addr %s482, 32
        %s484 = scalar_lea.vmem [#allocation8], %s483
        %p485 = pneg %p344
        %p486 = pneg %p341
        %s487 = sand.u32 %s35, 1
        %s488 = scalar_lea.sflag [#allocation9], %s487
        %s489 = sand.u32 %s331, 1
        %s490 = smul.addr %s489, 32
        %s491 = scalar_lea.vmem [#allocation10], %s490
        %v493 = vld [vmem:[%s435] sm:$0xff]
        %v494 = vld [vmem:[%s435 + $0x8] sm:$0xff]
        %v495 = vld [vmem:[%s435 + $0x10] sm:$0xff]
        %v496 = vld [vmem:[%s435 + $0x18] sm:$0xff]
        %v497 = vld [vmem:[%s435 + $0x20] sm:$0xff]
        %v498 = vld [vmem:[%s435 + $0x28] sm:$0xff]
        %v499 = vld [vmem:[%s435 + $0x30] sm:$0xff]
        %v500 = vld [vmem:[%s435 + $0x38] sm:$0xff]
        %vm501 = vcmask 523264
        %v502 = vsel %vm501, %v493, 0.0
        %v503 = vsel %vm501, %v494, 0.0
        %v504 = vadd.f32 %v502, %v503
        %v505 = vsel %vm501, %v495, 0.0
        %v506 = vadd.f32 %v504, %v505
        %v507 = vsel %vm501, %v496, 0.0
        %v508 = vadd.f32 %v506, %v507
        %v509 = vsel %vm501, %v497, 0.0
        %v510 = vadd.f32 %v508, %v509
        %v511 = vsel %vm501, %v498, 0.0
        %v512 = vadd.f32 %v510, %v511
        %v513 = vsel %vm501, %v499, 0.0
        %v514 = vadd.f32 %v512, %v513
        %v515 = vsel %vm501, %v500, 0.0
        %v516 = vadd.f32 %v514, %v515
        %v517 = vrot.slane %v516, 4
        %v518 = vadd.f32 %v516, %v517
        %v519 = vrot.slane %v518, 2
        %v520 = vadd.f32 %v518, %v519
        %v521 = vrot.slane %v520, 1
        %v522 = vadd.f32 %v520, %v521
        %v523 = vld [vmem:[%s1] sm:$0xff]
        %v524 = vld [vmem:[%s1 + $0x8] sm:$0xff]
        %v525 = vld [vmem:[%s1 + $0x10] sm:$0xff]
        %v526 = vld [vmem:[%s1 + $0x18] sm:$0xff]
        %v527 = vld [vmem:[%s1 + $0x20] sm:$0xff]
        %v528 = vld [vmem:[%s1 + $0x28] sm:$0xff]
        %v529 = vld [vmem:[%s1 + $0x30] sm:$0xff]
        %v530 = vld [vmem:[%s1 + $0x38] sm:$0xff]
        %v532 = vsel %vm501, %v522, 0
        %534 = vmatprep.subr.mxu0 0.0
        %535 = vmatpush1.msra.mxu0 0.0
        %536 = vmatprep.subr.mxu0 0.0
        %537 = vmatpush1.msra.mxu0 0.0
        %538 = vmatprep.subr.mxu0 0.0
        %539 = vmatpush1.msra.mxu0 0.0
        %540 = vmatprep.subr.mxu0 0.0
        %541 = vmatpush1.msra.mxu0 0.0
        %542 = vmatprep.subr.mxu0 0.0
        %543 = vmatpush1.msra.mxu0 0.0
        %544 = vmatprep.subr.mxu0 0.0
        %545 = vmatpush1.msra.mxu0 0.0
        %546 = vmatprep.subr.mxu0 0.0
        %547 = vmatpush1.msra.mxu0 0.0
        %548 = vmatprep.subr.mxu0 0.0
        %549 = vmatpush1.msra.mxu0 0.0
        %550 = vmatprep.subr.mxu0 0.0
        %551 = vmatpush1.msra.mxu0 %v530
        %552 = vmatprep.subr.mxu0 0.0
        %553 = vmatpush1.msra.mxu0 %v529
        %554 = vmatprep.subr.mxu0 0.0
        %555 = vmatpush1.msra.mxu0 %v528
        %556 = vmatprep.subr.mxu0 0.0
        %557 = vmatpush1.msra.mxu0 %v527
        %558 = vmatprep.subr.mxu0 0.0
        %559 = vmatpush1.msra.mxu0 %v526
        %560 = vmatprep.subr.mxu0 0.0
        %561 = vmatpush1.msra.mxu0 %v525
        %562 = vmatprep.subr.mxu0 0.0
        %563 = vmatpush1.msra.mxu0 %v524
        %564 = vmatprep.subr.mxu0 0.0
        %565 = vmatpush1.msra.mxu0 %v523
        %566 = vmatprep.subr.mxu0 0.0
        %567 = vmatpush2.msra.mxu0 0.0
        %568 = vmatprep.subr.mxu0 0.0
        %569 = vmatpush2.msra.mxu0 0.0
        %570 = vmatprep.subr.mxu0 0.0
        %571 = vmatpush2.msra.mxu0 0.0
        %572 = vmatprep.subr.mxu0 0.0
        %573 = vmatpush2.msra.mxu0 0.0
        %574 = vmatprep.subr.mxu0 0.0
        %575 = vmatpush2.msra.mxu0 0.0
        %576 = vmatprep.subr.mxu0 0.0
        %577 = vmatpush2.msra.mxu0 0.0
        %578 = vmatprep.subr.mxu0 0.0
        %579 = vmatpush2.msra.mxu0 0.0
        %580 = vmatprep.subr.mxu0 0.0
        %581 = vmatpush2.msra.mxu0 0.0
        %582 = vmatprep.subr.mxu0 0.0
        %583 = vmatpush2.msra.mxu0 0.0
        %584 = vmatprep.subr.mxu0 0.0
        %585 = vmatpush2.msra.mxu0 0.0
        %586 = vmatprep.subr.mxu0 0.0
        %587 = vmatpush2.msra.mxu0 0.0
        %588 = vmatprep.subr.mxu0 0.0
        %589 = vmatpush2.msra.mxu0 0.0
        %590 = vmatprep.subr.mxu0 0.0
        %591 = vmatpush2.msra.mxu0 0.0
        %592 = vmatprep.subr.mxu0 0.0
        %593 = vmatpush2.msra.mxu0 0.0
        %594 = vmatprep.subr.mxu0 0.0
        %595 = vmatpush2.msra.mxu0 0.0
        %596 = vmatprep.subr.mxu0 0.0
        %597 = vmatpush2.msra.mxu0 0.0
        %598 = vmatprep.mubr.f32.mxu0 0.0
        %599 = vmatmul.mubr.f32.gmra.mxu0 %v532
        %v600 = vpop.f32.mrf.mxu0
        %v601 = vadd.f32 0.0, %v600
        %v602 = vpop.f32.mrf.mxu0
        %603 = vdwg.mxu0
        %v604 = vld [vmem:[%s2] sm:$0xff]
        %v605 = vld [vmem:[%s2 + $0x8] sm:$0xff]
        %v606 = vld [vmem:[%s2 + $0x10] sm:$0xff]
        %v607 = vld [vmem:[%s2 + $0x18] sm:$0xff]
        %vm608 = vcmask 261120
        %v610 = vsel %vm608, %v601, 0
        %612 = vmatprep.subr.mxu0 0.0
        %613 = vmatpush1.msra.mxu0 0.0
        %614 = vmatprep.subr.mxu0 0.0
        %615 = vmatpush1.msra.mxu0 0.0
        %616 = vmatprep.subr.mxu0 0.0
        %617 = vmatpush1.msra.mxu0 0.0
        %618 = vmatprep.subr.mxu0 0.0
        %619 = vmatpush1.msra.mxu0 0.0
        %620 = vmatprep.subr.mxu0 0.0
        %621 = vmatpush1.msra.mxu0 0.0
        %622 = vmatprep.subr.mxu0 0.0
        %623 = vmatpush1.msra.mxu0 0.0
        %624 = vmatprep.subr.mxu0 0.0
        %625 = vmatpush1.msra.mxu0 0.0
        %626 = vmatprep.subr.mxu0 0.0
        %627 = vmatpush1.msra.mxu0 0.0
        %628 = vmatprep.subr.mxu0 0.0
        %629 = vmatpush1.msra.mxu0 0.0
        %630 = vmatprep.subr.mxu0 0.0
        %631 = vmatpush1.msra.mxu0 0.0
        %632 = vmatprep.subr.mxu0 0.0
        %633 = vmatpush1.msra.mxu0 0.0
        %634 = vmatprep.subr.mxu0 0.0
        %635 = vmatpush1.msra.mxu0 0.0
        %636 = vmatprep.subr.mxu0 0.0
        %637 = vmatpush1.msra.mxu0 %v607
        %638 = vmatprep.subr.mxu0 0.0
        %639 = vmatpush1.msra.mxu0 %v606
        %640 = vmatprep.subr.mxu0 0.0
        %641 = vmatpush1.msra.mxu0 %v605
        %642 = vmatprep.subr.mxu0 0.0
        %643 = vmatpush1.msra.mxu0 %v604
        %644 = vmatprep.subr.mxu0 0.0
        %645 = vmatpush2.msra.mxu0 0.0
        %646 = vmatprep.subr.mxu0 0.0
        %647 = vmatpush2.msra.mxu0 0.0
        %648 = vmatprep.subr.mxu0 0.0
        %649 = vmatpush2.msra.mxu0 0.0
        %650 = vmatprep.subr.mxu0 0.0
        %651 = vmatpush2.msra.mxu0 0.0
        %652 = vmatprep.subr.mxu0 0.0
        %653 = vmatpush2.msra.mxu0 0.0
        %654 = vmatprep.subr.mxu0 0.0
        %655 = vmatpush2.msra.mxu0 0.0
        %656 = vmatprep.subr.mxu0 0.0
        %657 = vmatpush2.msra.mxu0 0.0
        %658 = vmatprep.subr.mxu0 0.0
        %659 = vmatpush2.msra.mxu0 0.0
        %660 = vmatprep.subr.mxu0 0.0
        %661 = vmatpush2.msra.mxu0 0.0
        %662 = vmatprep.subr.mxu0 0.0
        %663 = vmatpush2.msra.mxu0 0.0
        %664 = vmatprep.subr.mxu0 0.0
        %665 = vmatpush2.msra.mxu0 0.0
        %666 = vmatprep.subr.mxu0 0.0
        %667 = vmatpush2.msra.mxu0 0.0
        %668 = vmatprep.subr.mxu0 0.0
        %669 = vmatpush2.msra.mxu0 0.0
        %670 = vmatprep.subr.mxu0 0.0
        %671 = vmatpush2.msra.mxu0 0.0
        %672 = vmatprep.subr.mxu0 0.0
        %673 = vmatpush2.msra.mxu0 0.0
        %674 = vmatprep.subr.mxu0 0.0
        %675 = vmatpush2.msra.mxu0 0.0
        %676 = vmatprep.mubr.f32.mxu0 0.0
        %677 = vmatmul.mubr.f32.gmra.mxu0 %v610
        %v678 = vpop.f32.mrf.mxu0
        %v679 = vadd.f32 0.0, %v678
        %v680 = vpop.f32.mrf.mxu0
        %681 = vdwg.mxu0
        %v682 = vlaneseq
        %v683 = vshrl.u32 %v682, 7
        %v684 = vsub.s32 0, %v683
        %v685 = vrot.slane %v679, %v684
        %v686 = vsub.f32 %v493, %v685
        %v687 = vsub.f32 %v494, %v685
        %v688 = vsub.f32 %v495, %v685
        %v689 = vsub.f32 %v496, %v685
        %v690 = vsub.f32 %v497, %v685
        %v691 = vsub.f32 %v498, %v685
        %v692 = vsub.f32 %v499, %v685
        %v693 = vsub.f32 %v500, %v685
        %v694 = vmul.f32 %v686, %v686
        %v695 = vmul.f32 %v687, %v687
        %v696 = vmul.f32 %v688, %v688
        %v697 = vmul.f32 %v689, %v689
        %v698 = vmul.f32 %v690, %v690
        %v699 = vmul.f32 %v691, %v691
        %v700 = vmul.f32 %v692, %v692
        %v701 = vmul.f32 %v693, %v693
        %v702 = vsel %vm501, %v694, 0.0
        %v703 = vsel %vm501, %v695, 0.0
        %v704 = vadd.f32 %v702, %v703
        %v705 = vsel %vm501, %v696, 0.0
        %v706 = vadd.f32 %v704, %v705
        %v707 = vsel %vm501, %v697, 0.0
        %v708 = vadd.f32 %v706, %v707
        %v709 = vsel %vm501, %v698, 0.0
        %v710 = vadd.f32 %v708, %v709
        %v711 = vsel %vm501, %v699, 0.0
        %v712 = vadd.f32 %v710, %v711
        %v713 = vsel %vm501, %v700, 0.0
        %v714 = vadd.f32 %v712, %v713
        %v715 = vsel %vm501, %v701, 0.0
        %v716 = vadd.f32 %v714, %v715
        %v717 = vrot.slane %v716, 4
        %v718 = vadd.f32 %v716, %v717
        %v719 = vrot.slane %v718, 2
        %v720 = vadd.f32 %v718, %v719
        %v721 = vrot.slane %v720, 1
        %v722 = vadd.f32 %v720, %v721
        %v724 = vsel %vm501, %v722, 0
        %726 = vmatprep.subr.mxu0 0.0
        %727 = vmatpush1.msra.mxu0 0.0
        %728 = vmatprep.subr.mxu0 0.0
        %729 = vmatpush1.msra.mxu0 0.0
        %730 = vmatprep.subr.mxu0 0.0
        %731 = vmatpush1.msra.mxu0 0.0
        %732 = vmatprep.subr.mxu0 0.0
        %733 = vmatpush1.msra.mxu0 0.0
        %734 = vmatprep.subr.mxu0 0.0
        %735 = vmatpush1.msra.mxu0 0.0
        %736 = vmatprep.subr.mxu0 0.0
        %737 = vmatpush1.msra.mxu0 0.0
        %738 = vmatprep.subr.mxu0 0.0
        %739 = vmatpush1.msra.mxu0 0.0
        %740 = vmatprep.subr.mxu0 0.0
        %741 = vmatpush1.msra.mxu0 0.0
        %742 = vmatprep.subr.mxu0 0.0
        %743 = vmatpush1.msra.mxu0 %v530
        %744 = vmatprep.subr.mxu0 0.0
        %745 = vmatpush1.msra.mxu0 %v529
        %746 = vmatprep.subr.mxu0 0.0
        %747 = vmatpush1.msra.mxu0 %v528
        %748 = vmatprep.subr.mxu0 0.0
        %749 = vmatpush1.msra.mxu0 %v527
        %750 = vmatprep.subr.mxu0 0.0
        %751 = vmatpush1.msra.mxu0 %v526
        %752 = vmatprep.subr.mxu0 0.0
        %753 = vmatpush1.msra.mxu0 %v525
        %754 = vmatprep.subr.mxu0 0.0
        %755 = vmatpush1.msra.mxu0 %v524
        %756 = vmatprep.subr.mxu0 0.0
        %757 = vmatpush1.msra.mxu0 %v523
        %758 = vmatprep.subr.mxu0 0.0
        %759 = vmatpush2.msra.mxu0 0.0
        %760 = vmatprep.subr.mxu0 0.0
        %761 = vmatpush2.msra.mxu0 0.0
        %762 = vmatprep.subr.mxu0 0.0
        %763 = vmatpush2.msra.mxu0 0.0
        %764 = vmatprep.subr.mxu0 0.0
        %765 = vmatpush2.msra.mxu0 0.0
        %766 = vmatprep.subr.mxu0 0.0
        %767 = vmatpush2.msra.mxu0 0.0
        %768 = vmatprep.subr.mxu0 0.0
        %769 = vmatpush2.msra.mxu0 0.0
        %770 = vmatprep.subr.mxu0 0.0
        %771 = vmatpush2.msra.mxu0 0.0
        %772 = vmatprep.subr.mxu0 0.0
        %773 = vmatpush2.msra.mxu0 0.0
        %774 = vmatprep.subr.mxu0 0.0
        %775 = vmatpush2.msra.mxu0 0.0
        %776 = vmatprep.subr.mxu0 0.0
        %777 = vmatpush2.msra.mxu0 0.0
        %778 = vmatprep.subr.mxu0 0.0
        %779 = vmatpush2.msra.mxu0 0.0
        %780 = vmatprep.subr.mxu0 0.0
        %781 = vmatpush2.msra.mxu0 0.0
        %782 = vmatprep.subr.mxu0 0.0
        %783 = vmatpush2.msra.mxu0 0.0
        %784 = vmatprep.subr.mxu0 0.0
        %785 = vmatpush2.msra.mxu0 0.0
        %786 = vmatprep.subr.mxu0 0.0
        %787 = vmatpush2.msra.mxu0 0.0
        %788 = vmatprep.subr.mxu0 0.0
        %789 = vmatpush2.msra.mxu0 0.0
        %790 = vmatprep.mubr.f32.mxu0 0.0
        %791 = vmatmul.mubr.f32.gmra.mxu0 %v724
        %v792 = vpop.f32.mrf.mxu0
        %v793 = vadd.f32 0.0, %v792
        %v794 = vpop.f32.mrf.mxu0
        %795 = vdwg.mxu0
        %v797 = vsel %vm608, %v793, 0
        %799 = vmatprep.subr.mxu0 0.0
        %800 = vmatpush1.msra.mxu0 0.0
        %801 = vmatprep.subr.mxu0 0.0
        %802 = vmatpush1.msra.mxu0 0.0
        %803 = vmatprep.subr.mxu0 0.0
        %804 = vmatpush1.msra.mxu0 0.0
        %805 = vmatprep.subr.mxu0 0.0
        %806 = vmatpush1.msra.mxu0 0.0
        %807 = vmatprep.subr.mxu0 0.0
        %808 = vmatpush1.msra.mxu0 0.0
        %809 = vmatprep.subr.mxu0 0.0
        %810 = vmatpush1.msra.mxu0 0.0
        %811 = vmatprep.subr.mxu0 0.0
        %812 = vmatpush1.msra.mxu0 0.0
        %813 = vmatprep.subr.mxu0 0.0
        %814 = vmatpush1.msra.mxu0 0.0
        %815 = vmatprep.subr.mxu0 0.0
        %816 = vmatpush1.msra.mxu0 0.0
        %817 = vmatprep.subr.mxu0 0.0
        %818 = vmatpush1.msra.mxu0 0.0
        %819 = vmatprep.subr.mxu0 0.0
        %820 = vmatpush1.msra.mxu0 0.0
        %821 = vmatprep.subr.mxu0 0.0
        %822 = vmatpush1.msra.mxu0 0.0
        %823 = vmatprep.subr.mxu0 0.0
        %824 = vmatpush1.msra.mxu0 %v607
        %825 = vmatprep.subr.mxu0 0.0
        %826 = vmatpush1.msra.mxu0 %v606
        %827 = vmatprep.subr.mxu0 0.0
        %828 = vmatpush1.msra.mxu0 %v605
        %829 = vmatprep.subr.mxu0 0.0
        %830 = vmatpush1.msra.mxu0 %v604
        %831 = vmatprep.subr.mxu0 0.0
        %832 = vmatpush2.msra.mxu0 0.0
        %833 = vmatprep.subr.mxu0 0.0
        %834 = vmatpush2.msra.mxu0 0.0
        %835 = vmatprep.subr.mxu0 0.0
        %836 = vmatpush2.msra.mxu0 0.0
        %837 = vmatprep.subr.mxu0 0.0
        %838 = vmatpush2.msra.mxu0 0.0
        %839 = vmatprep.subr.mxu0 0.0
        %840 = vmatpush2.msra.mxu0 0.0
        %841 = vmatprep.subr.mxu0 0.0
        %842 = vmatpush2.msra.mxu0 0.0
        %843 = vmatprep.subr.mxu0 0.0
        %844 = vmatpush2.msra.mxu0 0.0
        %845 = vmatprep.subr.mxu0 0.0
        %846 = vmatpush2.msra.mxu0 0.0
        %847 = vmatprep.subr.mxu0 0.0
        %848 = vmatpush2.msra.mxu0 0.0
        %849 = vmatprep.subr.mxu0 0.0
        %850 = vmatpush2.msra.mxu0 0.0
        %851 = vmatprep.subr.mxu0 0.0
        %852 = vmatpush2.msra.mxu0 0.0
        %853 = vmatprep.subr.mxu0 0.0
        %854 = vmatpush2.msra.mxu0 0.0
        %855 = vmatprep.subr.mxu0 0.0
        %856 = vmatpush2.msra.mxu0 0.0
        %857 = vmatprep.subr.mxu0 0.0
        %858 = vmatpush2.msra.mxu0 0.0
        %859 = vmatprep.subr.mxu0 0.0
        %860 = vmatpush2.msra.mxu0 0.0
        %861 = vmatprep.subr.mxu0 0.0
        %862 = vmatpush2.msra.mxu0 0.0
        %863 = vmatprep.mubr.f32.mxu0 0.0
        %864 = vmatmul.mubr.f32.gmra.mxu0 %v797
        %v865 = vpop.f32.mrf.mxu0
        %v866 = vadd.f32 1e-05, %v865
        %v867 = vpop.f32.mrf.mxu0
        %868 = vdwg.mxu0
        %v869 = vrsqrt.pop %v866
        %v870 = vld [vmem:[%s3] sm:$0x1]
        %v871 = vmul.f32 %v869, %v870
        %v872 = vlaneseq
        %v873 = vshrl.u32 %v872, 7
        %v874 = vsub.s32 0, %v873
        %v875 = vrot.slane %v871, %v874
        %v876 = vmul.f32 %v686, %v875
        %v877 = vmul.f32 %v687, %v875
        %v878 = vmul.f32 %v688, %v875
        %v879 = vmul.f32 %v689, %v875
        %v880 = vmul.f32 %v690, %v875
        %v881 = vmul.f32 %v691, %v875
        %v882 = vmul.f32 %v692, %v875
        %v883 = vmul.f32 %v693, %v875
        %v884 = vld [vmem:[%s4] sm:$0x1]
        %v886 = vlaneseq
        %v887 = vshrl.u32 %v886, 7
        %v888 = vsub.s32 0, %v887
        %v889 = vrot.slane %v884, %v888
        %v891 = vadd.f32 %v876, %v889
        %v892 = vadd.f32 %v877, %v889
        %v893 = vadd.f32 %v878, %v889
        %v894 = vadd.f32 %v879, %v889
        %v895 = vadd.f32 %v880, %v889
        %v896 = vadd.f32 %v881, %v889
        %v897 = vadd.f32 %v882, %v889
        %v898 = vadd.f32 %v883, %v889
        %v899 = vpack.c.bf16 %v892, %v891
        %v900 = vpack.c.bf16 %v894, %v893
        %v901 = vpack.c.bf16 %v896, %v895
        %v902 = vpack.c.bf16 %v898, %v897
        %v903 = vld [vmem:[%s5] sm:$0xf]
        %v904 = vld [vmem:[%s5 + $0x4] sm:$0xf]
        %v905 = vld [vmem:[%s5 + $0x8] sm:$0xf]
        %v906 = vld [vmem:[%s5 + $0xc] sm:$0xf]
        %v907 = vld [vmem:[%s5 + $0x10] sm:$0xf]
        %v908 = vld [vmem:[%s5 + $0x14] sm:$0xf]
        %v909 = vld [vmem:[%s5 + $0x18] sm:$0xf]
        %v910 = vld [vmem:[%s5 + $0x1c] sm:$0xf]
        %v911 = vld [vmem:[%s8] sm:$0x1]
        %v913 = vlaneseq
        %v914 = vshrl.u32 %v913, 7
        %v915 = vsub.s32 0, %v914
        %v916 = vrot.slane %v911, %v915
        %v926 = vunpack.c.l.b16 %v903
        %v927 = vunpack.c.l.b16 %v904
        %v928 = vunpack.c.l.b16 %v905
        %v929 = vunpack.c.l.b16 %v906
        %v930 = vunpack.c.l.b16 %v907
        %v931 = vunpack.c.l.b16 %v908
        %v932 = vunpack.c.l.b16 %v909
        %v933 = vunpack.c.l.b16 %v910
        %v934 = vpack.c.b16 %v927, %v926
        %v935 = vpack.c.b16 %v929, %v928
        %v936 = vpack.c.b16 %v931, %v930
        %v937 = vpack.c.b16 %v933, %v932
        %v943 = vsel %vm501, %v899, 0
        %v946 = vsel %vm501, %v900, 0
        %v949 = vsel %vm501, %v901, 0
        %v952 = vsel %vm501, %v902, 0
        %954 = vmatprep.subr.bf16.mxu0 0
        %955 = vmatpush1.bf16.msra.mxu0 0
        %956 = vmatprep.subr.bf16.mxu0 0
        %957 = vmatpush1.bf16.msra.mxu0 0
        %958 = vmatprep.subr.bf16.mxu0 0
        %959 = vmatpush1.bf16.msra.mxu0 0
        %960 = vmatprep.subr.bf16.mxu0 0
        %961 = vmatpush1.bf16.msra.mxu0 0
        %962 = vmatprep.subr.bf16.mxu0 0
        %963 = vmatpush1.bf16.msra.mxu0 %v937
        %964 = vmatprep.subr.bf16.mxu0 0
        %965 = vmatpush1.bf16.msra.mxu0 %v936
        %966 = vmatprep.subr.bf16.mxu0 0
        %967 = vmatpush1.bf16.msra.mxu0 %v935
        %968 = vmatprep.subr.bf16.mxu0 0
        %969 = vmatpush1.bf16.msra.mxu0 %v934
        %970 = vmatprep.subr.bf16.mxu0 0
        %971 = vmatpush2.bf16.msra.mxu0 0
        %972 = vmatprep.subr.bf16.mxu0 0
        %973 = vmatpush2.bf16.msra.mxu0 0
        %974 = vmatprep.subr.bf16.mxu0 0
        %975 = vmatpush2.bf16.msra.mxu0 0
        %976 = vmatprep.subr.bf16.mxu0 0
        %977 = vmatpush2.bf16.msra.mxu0 0
        %978 = vmatprep.subr.bf16.mxu0 0
        %979 = vmatpush2.bf16.msra.mxu0 0
        %980 = vmatprep.subr.bf16.mxu0 0
        %981 = vmatpush2.bf16.msra.mxu0 0
        %982 = vmatprep.subr.bf16.mxu0 0
        %983 = vmatpush2.bf16.msra.mxu0 0
        %984 = vmatprep.subr.bf16.mxu0 0
        %985 = vmatpush2.bf16.msra.mxu0 0
        %986 = vmatprep.mubr.bf16.mxu0 0
        %987 = vmatmul.mubr.bf16.gmra.mxu0 %v943
        %v988 = vpop.f32.mrf.mxu0
        %v989 = vadd.f32 %v916, %v988
        %v990 = vpop.f32.mrf.mxu0
        %v991 = vpop.f32.mrf.mxu0
        %v992 = vadd.f32 %v916, %v991
        %v993 = vpop.f32.mrf.mxu0
        %994 = vmatprep.mubr.bf16.mxu0 0
        %995 = vmatmul.mubr.bf16.gmra.mxu0 %v946
        %v996 = vpop.f32.mrf.mxu0
        %v997 = vadd.f32 %v916, %v996
        %v998 = vpop.f32.mrf.mxu0
        %v999 = vpop.f32.mrf.mxu0
        %v1000 = vadd.f32 %v916, %v999
        %v1001 = vpop.f32.mrf.mxu0
        %1002 = vmatprep.mubr.bf16.mxu0 0
        %1003 = vmatmul.mubr.bf16.gmra.mxu0 %v949
        %v1004 = vpop.f32.mrf.mxu0
        %v1005 = vadd.f32 %v916, %v1004
        %v1006 = vpop.f32.mrf.mxu0
        %v1007 = vpop.f32.mrf.mxu0
        %v1008 = vadd.f32 %v916, %v1007
        %v1009 = vpop.f32.mrf.mxu0
        %1010 = vmatprep.mubr.bf16.mxu0 0
        %1011 = vmatmul.mubr.bf16.gmra.mxu0 %v952
        %v1012 = vpop.f32.mrf.mxu0
        %v1013 = vadd.f32 %v916, %v1012
        %v1014 = vpop.f32.mrf.mxu0
        %v1015 = vpop.f32.mrf.mxu0
        %v1016 = vadd.f32 %v916, %v1015
        %v1017 = vpop.f32.mrf.mxu0
        %1018 = vdwg.mxu0
        %v1019 = vpack.c.bf16 %v992, %v989
        %v1020 = vpack.c.bf16 %v1000, %v997
        %v1021 = vpack.c.bf16 %v1008, %v1005
        %v1022 = vpack.c.bf16 %v1016, %v1013
        %v1027 = vunpack.c.l.b16 %v1019
        %v1028 = vunpack.c.h.b16 %v1019
        %v1029 = vunpack.c.l.b16 %v1020
        %v1030 = vunpack.c.h.b16 %v1020
        %v1031 = vunpack.c.l.b16 %v1021
        %v1032 = vunpack.c.h.b16 %v1021
        %v1033 = vunpack.c.l.b16 %v1022
        %v1034 = vunpack.c.h.b16 %v1022
        %v1035 = vpack.c.b16 %v1027, %v1027
        %v1036 = vpack.c.b16 %v1028, %v1028
        %v1037 = vpack.c.b16 %v1029, %v1029
        %v1038 = vpack.c.b16 %v1030, %v1030
        %v1039 = vpack.c.b16 %v1031, %v1031
        %v1040 = vpack.c.b16 %v1032, %v1032
        %v1041 = vpack.c.b16 %v1033, %v1033
        %v1042 = vpack.c.b16 %v1034, %v1034
        %vm1051 = vcmask 519168
        %1052 = vst.msk [vmem:[%s477] sm:$0xf] %vm1051, %v1035
        %1053 = vst.msk [vmem:[%s477 + $0x4] sm:$0xf] %vm1051, %v1036
        %1054 = vst.msk [vmem:[%s477 + $0x8] sm:$0xf] %vm1051, %v1037
        %1055 = vst.msk [vmem:[%s477 + $0xc] sm:$0xf] %vm1051, %v1038
        %1056 = vst.msk [vmem:[%s477 + $0x10] sm:$0xf] %vm1051, %v1039
        %1057 = vst.msk [vmem:[%s477 + $0x14] sm:$0xf] %vm1051, %v1040
        %1058 = vst.msk [vmem:[%s477 + $0x18] sm:$0xf] %vm1051, %v1041
        %1059 = vst.msk [vmem:[%s477 + $0x1c] sm:$0xf] %vm1051, %v1042
        %v1060 = vld [vmem:[%s6] sm:$0xf]
        %v1061 = vld [vmem:[%s6 + $0x4] sm:$0xf]
        %v1062 = vld [vmem:[%s6 + $0x8] sm:$0xf]
        %v1063 = vld [vmem:[%s6 + $0xc] sm:$0xf]
        %v1064 = vld [vmem:[%s6 + $0x10] sm:$0xf]
        %v1065 = vld [vmem:[%s6 + $0x14] sm:$0xf]
        %v1066 = vld [vmem:[%s6 + $0x18] sm:$0xf]
        %v1067 = vld [vmem:[%s6 + $0x1c] sm:$0xf]
        %v1068 = vld [vmem:[%s9] sm:$0x1]
        %v1070 = vlaneseq
        %v1071 = vshrl.u32 %v1070, 7
        %v1072 = vsub.s32 0, %v1071
        %v1073 = vrot.slane %v1068, %v1072
        %v1083 = vunpack.c.l.b16 %v1060
        %v1084 = vunpack.c.l.b16 %v1061
        %v1085 = vunpack.c.l.b16 %v1062
        %v1086 = vunpack.c.l.b16 %v1063
        %v1087 = vunpack.c.l.b16 %v1064
        %v1088 = vunpack.c.l.b16 %v1065
        %v1089 = vunpack.c.l.b16 %v1066
        %v1090 = vunpack.c.l.b16 %v1067
        %v1091 = vpack.c.b16 %v1084, %v1083
        %v1092 = vpack.c.b16 %v1086, %v1085
        %v1093 = vpack.c.b16 %v1088, %v1087
        %v1094 = vpack.c.b16 %v1090, %v1089
        %1099 = vmatprep.subr.bf16.mxu0 0
        %1100 = vmatpush1.bf16.msra.mxu0 0
        %1101 = vmatprep.subr.bf16.mxu0 0
        %1102 = vmatpush1.bf16.msra.mxu0 0
        %1103 = vmatprep.subr.bf16.mxu0 0
        %1104 = vmatpush1.bf16.msra.mxu0 0
        %1105 = vmatprep.subr.bf16.mxu0 0
        %1106 = vmatpush1.bf16.msra.mxu0 0
        %1107 = vmatprep.subr.bf16.mxu0 0
        %1108 = vmatpush1.bf16.msra.mxu0 %v1094
        %1109 = vmatprep.subr.bf16.mxu0 0
        %1110 = vmatpush1.bf16.msra.mxu0 %v1093
        %1111 = vmatprep.subr.bf16.mxu0 0
        %1112 = vmatpush1.bf16.msra.mxu0 %v1092
        %1113 = vmatprep.subr.bf16.mxu0 0
        %1114 = vmatpush1.bf16.msra.mxu0 %v1091
        %1115 = vmatprep.subr.bf16.mxu0 0
        %1116 = vmatpush2.bf16.msra.mxu0 0
        %1117 = vmatprep.subr.bf16.mxu0 0
        %1118 = vmatpush2.bf16.msra.mxu0 0
        %1119 = vmatprep.subr.bf16.mxu0 0
        %1120 = vmatpush2.bf16.msra.mxu0 0
        %1121 = vmatprep.subr.bf16.mxu0 0
        %1122 = vmatpush2.bf16.msra.mxu0 0
        %1123 = vmatprep.subr.bf16.mxu0 0
        %1124 = vmatpush2.bf16.msra.mxu0 0
        %1125 = vmatprep.subr.bf16.mxu0 0
        %1126 = vmatpush2.bf16.msra.mxu0 0
        %1127 = vmatprep.subr.bf16.mxu0 0
        %1128 = vmatpush2.bf16.msra.mxu0 0
        %1129 = vmatprep.subr.bf16.mxu0 0
        %1130 = vmatpush2.bf16.msra.mxu0 0
        %1131 = vmatprep.mubr.bf16.mxu0 0
        %1132 = vmatmul.mubr.bf16.gmra.mxu0 %v943
        %v1133 = vpop.f32.mrf.mxu0
        %v1134 = vadd.f32 %v1073, %v1133
        %v1135 = vpop.f32.mrf.mxu0
        %v1136 = vpop.f32.mrf.mxu0
        %v1137 = vadd.f32 %v1073, %v1136
        %v1138 = vpop.f32.mrf.mxu0
        %1139 = vmatprep.mubr.bf16.mxu0 0
        %1140 = vmatmul.mubr.bf16.gmra.mxu0 %v946
        %v1141 = vpop.f32.mrf.mxu0
        %v1142 = vadd.f32 %v1073, %v1141
        %v1143 = vpop.f32.mrf.mxu0
        %v1144 = vpop.f32.mrf.mxu0
        %v1145 = vadd.f32 %v1073, %v1144
        %v1146 = vpop.f32.mrf.mxu0
        %1147 = vmatprep.mubr.bf16.mxu0 0
        %1148 = vmatmul.mubr.bf16.gmra.mxu0 %v949
        %v1149 = vpop.f32.mrf.mxu0
        %v1150 = vadd.f32 %v1073, %v1149
        %v1151 = vpop.f32.mrf.mxu0
        %v1152 = vpop.f32.mrf.mxu0
        %v1153 = vadd.f32 %v1073, %v1152
        %v1154 = vpop.f32.mrf.mxu0
        %1155 = vmatprep.mubr.bf16.mxu0 0
        %1156 = vmatmul.mubr.bf16.gmra.mxu0 %v952
        %v1157 = vpop.f32.mrf.mxu0
        %v1158 = vadd.f32 %v1073, %v1157
        %v1159 = vpop.f32.mrf.mxu0
        %v1160 = vpop.f32.mrf.mxu0
        %v1161 = vadd.f32 %v1073, %v1160
        %v1162 = vpop.f32.mrf.mxu0
        %1163 = vdwg.mxu0
        %v1164 = vpack.c.bf16 %v1137, %v1134
        %v1165 = vpack.c.bf16 %v1145, %v1142
        %v1166 = vpack.c.bf16 %v1153, %v1150
        %v1167 = vpack.c.bf16 %v1161, %v1158
        %v1172 = vunpack.c.l.b16 %v1164
        %v1173 = vunpack.c.h.b16 %v1164
        %v1174 = vunpack.c.l.b16 %v1165
        %v1175 = vunpack.c.h.b16 %v1165
        %v1176 = vunpack.c.l.b16 %v1166
        %v1177 = vunpack.c.h.b16 %v1166
        %v1178 = vunpack.c.l.b16 %v1167
        %v1179 = vunpack.c.h.b16 %v1167
        %v1180 = vpack.c.b16 %v1172, %v1172
        %v1181 = vpack.c.b16 %v1173, %v1173
        %v1182 = vpack.c.b16 %v1174, %v1174
        %v1183 = vpack.c.b16 %v1175, %v1175
        %v1184 = vpack.c.b16 %v1176, %v1176
        %v1185 = vpack.c.b16 %v1177, %v1177
        %v1186 = vpack.c.b16 %v1178, %v1178
        %v1187 = vpack.c.b16 %v1179, %v1179
        %1196 = vst.msk [vmem:[%s484] sm:$0xf] %vm1051, %v1180
        %1197 = vst.msk [vmem:[%s484 + $0x4] sm:$0xf] %vm1051, %v1181
        %1198 = vst.msk [vmem:[%s484 + $0x8] sm:$0xf] %vm1051, %v1182
        %1199 = vst.msk [vmem:[%s484 + $0xc] sm:$0xf] %vm1051, %v1183
        %1200 = vst.msk [vmem:[%s484 + $0x10] sm:$0xf] %vm1051, %v1184
        %1201 = vst.msk [vmem:[%s484 + $0x14] sm:$0xf] %vm1051, %v1185
        %1202 = vst.msk [vmem:[%s484 + $0x18] sm:$0xf] %vm1051, %v1186
        %1203 = vst.msk [vmem:[%s484 + $0x1c] sm:$0xf] %vm1051, %v1187
        %v1204 = vld [vmem:[#allocation5] sm:$0xf]
        %v1205 = vld [vmem:[#allocation5 + $0x4] sm:$0xf]
        %v1206 = vld [vmem:[#allocation5 + $0x8] sm:$0xf]
        %v1207 = vld [vmem:[#allocation5 + $0xc] sm:$0xf]
        %v1208 = vld [vmem:[#allocation5 + $0x10] sm:$0xf]
        %v1209 = vld [vmem:[#allocation5 + $0x14] sm:$0xf]
        %v1210 = vld [vmem:[#allocation5 + $0x18] sm:$0xf]
        %v1211 = vld [vmem:[#allocation5 + $0x1c] sm:$0xf]
        %v1212 = vld [vmem:[%s10] sm:$0x1]
        %v1214 = vlaneseq
        %v1215 = vshrl.u32 %v1214, 7
        %v1216 = vsub.s32 0, %v1215
        %v1217 = vrot.slane %v1212, %v1216
        %v1227 = vunpack.c.l.b16 %v1204
        %v1228 = vunpack.c.l.b16 %v1205
        %v1229 = vunpack.c.l.b16 %v1206
        %v1230 = vunpack.c.l.b16 %v1207
        %v1231 = vunpack.c.l.b16 %v1208
        %v1232 = vunpack.c.l.b16 %v1209
        %v1233 = vunpack.c.l.b16 %v1210
        %v1234 = vunpack.c.l.b16 %v1211
        %v1235 = vpack.c.b16 %v1228, %v1227
        %v1236 = vpack.c.b16 %v1230, %v1229
        %v1237 = vpack.c.b16 %v1232, %v1231
        %v1238 = vpack.c.b16 %v1234, %v1233
        %1243 = vmatprep.subr.bf16.mxu0 0
        %1244 = vmatpush1.bf16.msra.mxu0 0
        %1245 = vmatprep.subr.bf16.mxu0 0
        %1246 = vmatpush1.bf16.msra.mxu0 0
        %1247 = vmatprep.subr.bf16.mxu0 0
        %1248 = vmatpush1.bf16.msra.mxu0 0
        %1249 = vmatprep.subr.bf16.mxu0 0
        %1250 = vmatpush1.bf16.msra.mxu0 0
        %1251 = vmatprep.subr.bf16.mxu0 0
        %1252 = vmatpush1.bf16.msra.mxu0 %v1238
        %1253 = vmatprep.subr.bf16.mxu0 0
        %1254 = vmatpush1.bf16.msra.mxu0 %v1237
        %1255 = vmatprep.subr.bf16.mxu0 0
        %1256 = vmatpush1.bf16.msra.mxu0 %v1236
        %1257 = vmatprep.subr.bf16.mxu0 0
        %1258 = vmatpush1.bf16.msra.mxu0 %v1235
        %1259 = vmatprep.subr.bf16.mxu0 0
        %1260 = vmatpush2.bf16.msra.mxu0 0
        %1261 = vmatprep.subr.bf16.mxu0 0
        %1262 = vmatpush2.bf16.msra.mxu0 0
        %1263 = vmatprep.subr.bf16.mxu0 0
        %1264 = vmatpush2.bf16.msra.mxu0 0
        %1265 = vmatprep.subr.bf16.mxu0 0
        %1266 = vmatpush2.bf16.msra.mxu0 0
        %1267 = vmatprep.subr.bf16.mxu0 0
        %1268 = vmatpush2.bf16.msra.mxu0 0
        %1269 = vmatprep.subr.bf16.mxu0 0
        %1270 = vmatpush2.bf16.msra.mxu0 0
        %1271 = vmatprep.subr.bf16.mxu0 0
        %1272 = vmatpush2.bf16.msra.mxu0 0
        %1273 = vmatprep.subr.bf16.mxu0 0
        %1274 = vmatpush2.bf16.msra.mxu0 0
        %1275 = vmatprep.mubr.bf16.mxu0 0
        %1276 = vmatmul.mubr.bf16.gmra.mxu0 %v943
        %v1277 = vpop.f32.mrf.mxu0
        %v1278 = vadd.f32 %v1217, %v1277
        %v1279 = vpop.f32.mrf.mxu0
        %v1280 = vpop.f32.mrf.mxu0
        %v1281 = vadd.f32 %v1217, %v1280
        %v1282 = vpop.f32.mrf.mxu0
        %1283 = vmatprep.mubr.bf16.mxu0 0
        %1284 = vmatmul.mubr.bf16.gmra.mxu0 %v946
        %v1285 = vpop.f32.mrf.mxu0
        %v1286 = vadd.f32 %v1217, %v1285
        %v1287 = vpop.f32.mrf.mxu0
        %v1288 = vpop.f32.mrf.mxu0
        %v1289 = vadd.f32 %v1217, %v1288
        %v1290 = vpop.f32.mrf.mxu0
        %1291 = vmatprep.mubr.bf16.mxu0 0
        %1292 = vmatmul.mubr.bf16.gmra.mxu0 %v949
        %v1293 = vpop.f32.mrf.mxu0
        %v1294 = vadd.f32 %v1217, %v1293
        %v1295 = vpop.f32.mrf.mxu0
        %v1296 = vpop.f32.mrf.mxu0
        %v1297 = vadd.f32 %v1217, %v1296
        %v1298 = vpop.f32.mrf.mxu0
        %1299 = vmatprep.mubr.bf16.mxu0 0
        %1300 = vmatmul.mubr.bf16.gmra.mxu0 %v952
        %v1301 = vpop.f32.mrf.mxu0
        %v1302 = vadd.f32 %v1217, %v1301
        %v1303 = vpop.f32.mrf.mxu0
        %v1304 = vpop.f32.mrf.mxu0
        %v1305 = vadd.f32 %v1217, %v1304
        %v1306 = vpop.f32.mrf.mxu0
        %1307 = vdwg.mxu0
        %v1308 = vpack.c.bf16 %v1281, %v1278
        %v1309 = vpack.c.bf16 %v1289, %v1286
        %v1310 = vpack.c.bf16 %v1297, %v1294
        %v1311 = vpack.c.bf16 %v1305, %v1302
        %v1316 = vunpack.c.l.b16 %v1308
        %v1317 = vunpack.c.h.b16 %v1308
        %v1318 = vunpack.c.l.b16 %v1309
        %v1319 = vunpack.c.h.b16 %v1309
        %v1320 = vunpack.c.l.b16 %v1310
        %v1321 = vunpack.c.h.b16 %v1310
        %v1322 = vunpack.c.l.b16 %v1311
        %v1323 = vunpack.c.h.b16 %v1311
        %v1324 = vpack.c.b16 %v1316, %v1316
        %v1325 = vpack.c.b16 %v1317, %v1317
        %v1326 = vpack.c.b16 %v1318, %v1318
        %v1327 = vpack.c.b16 %v1319, %v1319
        %v1328 = vpack.c.b16 %v1320, %v1320
        %v1329 = vpack.c.b16 %v1321, %v1321
        %v1330 = vpack.c.b16 %v1322, %v1322
        %v1331 = vpack.c.b16 %v1323, %v1323
        %1340 = vst.msk [vmem:[%s491] sm:$0xf] %vm1051, %v1324
        %1341 = vst.msk [vmem:[%s491 + $0x4] sm:$0xf] %vm1051, %v1325
        %1342 = vst.msk [vmem:[%s491 + $0x8] sm:$0xf] %vm1051, %v1326
        %1343 = vst.msk [vmem:[%s491 + $0xc] sm:$0xf] %vm1051, %v1327
        %1344 = vst.msk [vmem:[%s491 + $0x10] sm:$0xf] %vm1051, %v1328
        %1345 = vst.msk [vmem:[%s491 + $0x14] sm:$0xf] %vm1051, %v1329
        %1346 = vst.msk [vmem:[%s491 + $0x18] sm:$0xf] %vm1051, %v1330
        %1347 = vst.msk [vmem:[%s491 + $0x1c] sm:$0xf] %vm1051, %v1331
        %s1348 = sand.u32 %s279, 1
        %s1349 = scalar_lea.sflag [#allocation4], %s1348
        %s1350 = sand.u32 %s279, 1
        %s1351 = smul.addr %s1350, 32
        %s1352 = scalar_lea.vmem [#allocation7], %s1351
        %s1353 = sand.u32 %s35, 1
        %s1354 = scalar_lea.sflag [#allocation9], %s1353
        %s1355 = sand.u32 %s305, 1
        %s1356 = smul.addr %s1355, 32
        %s1357 = scalar_lea.vmem [#allocation8], %s1356
        %s1358 = sand.u32 %s35, 1
        %s1359 = scalar_lea.sflag [#allocation9], %s1358
        %s1360 = sand.u32 %s331, 1
        %s1361 = smul.addr %s1360, 32
        %s1362 = scalar_lea.vmem [#allocation10], %s1361
        // Predicated region
        $region73: #{tpu_custom_call.1} parent=63 // pred_check
          %p1363 = pneg %p289
        $region74: #{tpu_custom_call.1} parent=63 // pred_check_branch
          %1365 = sbr.rel (%p1363) target = $region76
        $region75: #{tpu_custom_call.1} parent=63 // pred_region
          %s1367 = ssub.s32 512, 512
          %1368 = vsyncadd %s1349, %s1367
          %s1369 = smul.addr %s35, 8
          %s1370 = smul.addr %s1369, 64
          %s1371 = scalar_lea.hbm %s11, %s1370
          %s1372 = sshll.u32 %s1352, 4
          %s1373 = int_to_ptr.vmem [resolvable:$true] %s1372
          %1378 = dma.vmem_to_hbm [thread:$0]  %s1373, 512, %s1371, %s1349, 64, 64, 4
        $region76: #{tpu_custom_call.1} parent=63 // pred_fallthru
          _
        // Predicated region
        $region77: #{tpu_custom_call.1} parent=63 // pred_check
          %p1379 = pneg %p315
        $region78: #{tpu_custom_call.1} parent=63 // pred_check_branch
          %1381 = sbr.rel (%p1379) target = $region80
        $region79: #{tpu_custom_call.1} parent=63 // pred_region
          %s1383 = ssub.s32 512, 512
          %1384 = vsyncadd %s1354, %s1383
          %s1385 = smul.addr %s35, 8
          %s1386 = smul.addr %s1385, 64
          %s1387 = scalar_lea.hbm %s12, %s1386
          %s1388 = sshll.u32 %s1357, 4
          %s1389 = int_to_ptr.vmem [resolvable:$true] %s1388
          %1394 = dma.vmem_to_hbm [thread:$0]  %s1389, 512, %s1387, %s1354, 64, 64, 4
        $region80: #{tpu_custom_call.1} parent=63 // pred_fallthru
          _
        // Predicated region
        $region81: #{tpu_custom_call.1} parent=63 // pred_check
          %p1395 = pneg %p341
        $region82: #{tpu_custom_call.1} parent=63 // pred_check_branch
          %1397 = sbr.rel (%p1395) target = $region84
        $region83: #{tpu_custom_call.1} parent=63 // pred_region
          %s1399 = ssub.s32 512, 512
          %1400 = vsyncadd %s1359, %s1399
          %s1401 = smul.addr %s35, 8
          %s1402 = smul.addr %s1401, 64
          %s1403 = scalar_lea.hbm %s13, %s1402
          %s1404 = sshll.u32 %s1362, 4
          %s1405 = int_to_ptr.vmem [resolvable:$true] %s1404
          %1410 = dma.vmem_to_hbm [thread:$0]  %s1405, 512, %s1403, %s1359, 64, 64, 4
        $region84: #{tpu_custom_call.1} parent=63 // pred_fallthru
          _
      $region64: #{tpu_custom_call.1} parent=5 // pred_fallthru
        _
      %p1411 = scmp.le.s32.totalorder 2, %s30
      // Predicated region
      $region85: #{tpu_custom_call.1} parent=5 // pred_check
        %p1412 = pneg %p1411
      $region86: #{tpu_custom_call.1} parent=5 // pred_check_branch
        %1414 = sbr.rel (%p1412) target = $region88
      $region87: #{tpu_custom_call.1} parent=5 // pred_region
        %s1415 = ssub.s32 %s30, 2
        // Predicated region
        $region89: #{tpu_custom_call.1} parent=87 // pred_check
          %p1416 = pneg %p295
        $region90: #{tpu_custom_call.1} parent=87 // pred_check_branch
          %1418 = sbr.rel (%p1416) target = $region92
        $region91: #{tpu_custom_call.1} parent=87 // pred_region
          %s1419 = sand.u32 %s280, 1
          %s1420 = scalar_lea.sflag [#allocation4], %s1419
          %s1421 = sand.u32 %s280, 1
          %s1422 = smul.addr %s1421, 32
          %s1423 = scalar_lea.vmem [#allocation7], %s1422
          %1424 = dma.done %s1420, 512
        $region92: #{tpu_custom_call.1} parent=87 // pred_fallthru
          _
        // Predicated region
        $region93: #{tpu_custom_call.1} parent=87 // pred_check
          %p1425 = pneg %p321
        $region94: #{tpu_custom_call.1} parent=87 // pred_check_branch
          %1427 = sbr.rel (%p1425) target = $region96
        $region95: #{tpu_custom_call.1} parent=87 // pred_region
          %s1428 = sand.u32 %s36, 1
          %s1429 = scalar_lea.sflag [#allocation9], %s1428
          %s1430 = sand.u32 %s306, 1
          %s1431 = smul.addr %s1430, 32
          %s1432 = scalar_lea.vmem [#allocation8], %s1431
          %1433 = dma.done %s1429, 512
        $region96: #{tpu_custom_call.1} parent=87 // pred_fallthru
          _
        // Predicated region
        $region97: #{tpu_custom_call.1} parent=87 // pred_check
          %p1434 = pneg %p347
        $region98: #{tpu_custom_call.1} parent=87 // pred_check_branch
          %1436 = sbr.rel (%p1434) target = $region100
        $region99: #{tpu_custom_call.1} parent=87 // pred_region
          %s1437 = sand.u32 %s36, 1
          %s1438 = scalar_lea.sflag [#allocation9], %s1437
          %s1439 = sand.u32 %s332, 1
          %s1440 = smul.addr %s1439, 32
          %s1441 = scalar_lea.vmem [#allocation10], %s1440
          %1442 = dma.done %s1438, 512
        $region100: #{tpu_custom_call.1} parent=87 // pred_fallthru
          _
      $region88: #{tpu_custom_call.1} parent=5 // pred_fallthru
        _
    $region6: #{tpu_custom_call.1} parent=1 // loop_footer
      %s34 = sadd.s32 1, %s30
    $region7: #{tpu_custom_call.1} parent=1 // loop_footer_branch
      %29 = sbr.rel target = $region3
    $region8: #{tpu_custom_call.1} parent=1 // loop_exit
      _
    %1443 = vsyncpa [#allocation3], 1
    %s1444 = scalar_lea.sflag [#allocation3], 1
    %1445 = vsyncpa %s1444, 1
    %1446 = vsyncpa [#allocation6], 1
    %1447 = vsyncpa [#allocation4], 1
    %s1448 = scalar_lea.sflag [#allocation4], 1
    %1449 = vsyncpa %s1448, 1
    %1450 = vsyncpa [#allocation9], 1
    %s1451 = scalar_lea.sflag [#allocation9], 1
    %1452 = vsyncpa %s1451, 1

</llo_original>
